<compile_context>
chip_gen: v7x
topology: tpu7x:2x2x1
jax: 0.10.0
libtpu: 0.0.40
codegen_flags: <defaults>
</compile_context>

<pallas_src>
import functools

import jax
import jax.numpy as jnp
from jax.experimental import pallas as pl
from jax.experimental.pallas import tpu as pltpu


_VMEM_LIMIT = 48 * 1024 * 1024  # explicit scoped-VMEM budget (fits v7x 64 MiB w/ headroom)


def _round_up(n, m):
    return ((n + m - 1) // m) * m


def _pick_time_chunk(T, max_chunk=32):
    """Largest divisor of T that is <= max_chunk (time-chunk for the recurrence grid)."""
    c = min(T, max_chunk)
    while T % c:
        c -= 1
    return c


# -----------------------------------------------------------------------------
# Row-tiled GEMM (+ bias) kernel — used for the hoisted input projection.
# -----------------------------------------------------------------------------
def _matmul_bias_kernel(x_ref, w_ref, b_ref, o_ref):
    o_ref[...] = (
        jnp.dot(x_ref[...], w_ref[...], preferred_element_type=jnp.float32)
        + b_ref[...]
    ).astype(o_ref.dtype)


def _matmul_bias(x_flat, w_t, bias_row, *, max_rows=512):
    """(N, K) @ (K, G) + (1, G), row-tiled, 'parallel' grid (megacore-shardable)."""
    N, K = x_flat.shape
    G = w_t.shape[1]
    tile = min(max_rows, _round_up(N, 8))
    n_pad = _round_up(N, tile)
    if n_pad != N:
        x_flat = jnp.pad(x_flat, ((0, n_pad - N), (0, 0)))
    out = pl.pallas_call(
        _matmul_bias_kernel,
        out_shape=jax.ShapeDtypeStruct((n_pad, G), jnp.float32),
        grid=(n_pad // tile,),
        in_specs=[
            pl.BlockSpec((tile, K), lambda i: (i, 0)),
            pl.BlockSpec((K, G), lambda i: (0, 0)),   # weight: constant index_map
            pl.BlockSpec((1, G), lambda i: (0, 0)),   # bias
        ],
        out_specs=pl.BlockSpec((tile, G), lambda i: (i, 0)),
        compiler_params=pltpu.CompilerParams(
            dimension_semantics=("parallel",),
            vmem_limit_bytes=_VMEM_LIMIT),
    )(x_flat, w_t, bias_row)
    return out[:N] if n_pad != N else out


# -----------------------------------------------------------------------------
# LSTM recurrence kernel: chunked time grid, h/c persisted in VMEM scratch.
# Per timestep only h @ W_hh runs on the serial critical path (gates_x is
# precomputed, bias already folded in).
# -----------------------------------------------------------------------------
def _lstm_rec_kernel(gx_ref, whh_ref, y_ref, h_ref, c_ref):
    # gx_ref : (Tc, B, 4H)  precomputed x @ W_ih^T + b, gate order [i, f, o, g]
    # whh_ref: (H, 4H)      recurrent weights, gate order [i, f, o, g]
    # y_ref  : (Tc, B, H)   hidden-state output slab for this chunk
    # h_ref, c_ref: (B, H)  state scratch, persists across the time grid
    @pl.when(pl.program_id(0) == 0)
    def _():
        h_ref[...] = jnp.zeros_like(h_ref)
        c_ref[...] = jnp.zeros_like(c_ref)

    H = h_ref.shape[-1]
    Tc = gx_ref.shape[0]

    def step(tc, carry):
        h, c = carry
        gates = gx_ref[tc] + jnp.dot(h, whh_ref[...],
                                     preferred_element_type=jnp.float32)
        # Gate order [i, f, o | g]: sigmoid on one contiguous 3H region,
        # tanh on the trailing H region.
        ifo = jax.nn.sigmoid(gates[:, : 3 * H])
        g_g = jnp.tanh(gates[:, 3 * H:])
        i_g = ifo[:, :H]
        f_g = ifo[:, H:2 * H]
        o_g = ifo[:, 2 * H:]
        c = f_g * c + i_g * g_g
        h = o_g * jnp.tanh(c)
        y_ref[tc] = h.astype(y_ref.dtype)
        return h, c

    h, c = jax.lax.fori_loop(0, Tc, step, (h_ref[...], c_ref[...]), unroll=True)
    h_ref[...] = h
    c_ref[...] = c


def lstm_layer(x_tbd, w_ih, w_hh, b_ih, b_hh, *, max_time_chunk=32):
    """One LSTM layer. x_tbd: (T, B, D_in) f32, PyTorch weight layouts. -> (T, B, H)."""
    T, B, D_in = x_tbd.shape
    H = w_hh.shape[1]

    # Reorder PyTorch gate blocks [i, f, g, o] -> [i, f, o, g].
    def _reorder(w):
        wi, wf, wg, wo = jnp.split(w, 4, axis=0)
        return jnp.concatenate([wi, wf, wo, wg], axis=0)

    wih_t = jnp.transpose(_reorder(w_ih))            # (D_in, 4H)
    whh_t = jnp.transpose(_reorder(w_hh))            # (H, 4H)
    bias = _reorder(b_ih + b_hh).reshape(1, 4 * H)   # bias folded into input proj

    # (1) Hoisted input projection: one big GEMM over all T*B rows.
    gx = _matmul_bias(x_tbd.reshape(T * B, D_in), wih_t, bias).reshape(T, B, 4 * H)

    # (2) Serial recurrence, chunked over time to amortize per-grid-step overhead
    #     and make the hidden-state writeback a lane-dense slab store.
    Tc = _pick_time_chunk(T, max_time_chunk)
    return pl.pallas_call(
        _lstm_rec_kernel,
        out_shape=jax.ShapeDtypeStruct((T, B, H), jnp.float32),
        grid_spec=pltpu.PrefetchScalarGridSpec(
            num_scalar_prefetch=0,
            grid=(T // Tc,),
            in_specs=[
                pl.BlockSpec((Tc, B, 4 * H), lambda t: (t, 0, 0)),
                # Loop-invariant W_hh (constant index_map -> fetched once).  For
                # very large H, single-buffer it (pipeline_mode=pl.Buffered(1))
                # to halve its VMEM footprint on v7x; negligible at these shapes.
                pl.BlockSpec((H, 4 * H), lambda t: (0, 0)),
            ],
            out_specs=pl.BlockSpec((Tc, B, H), lambda t: (t, 0, 0)),
            scratch_shapes=[
                pltpu.VMEM((B, H), jnp.float32),   # h state
                pltpu.VMEM((B, H), jnp.float32),   # c state
            ],
        ),
        compiler_params=pltpu.CompilerParams(
            # Recurrence is inherently serial over time.  (A 2-way batch-split
            # "parallel" leading axis would exploit v7x megacore, but only when
            # B/2 is a multiple of 8 — not applicable at B=2.)
            dimension_semantics=("arbitrary",),
            vmem_limit_bytes=_VMEM_LIMIT),
    )(gx, whh_t)


# -----------------------------------------------------------------------------
# fc + tanh head: row-tiled GEMM, output lane dim padded to 128 (lane-dense vst).
# -----------------------------------------------------------------------------
def _fc_tanh_kernel(y_ref, w_ref, b_ref, o_ref):
    o_ref[...] = jnp.tanh(
        jnp.dot(y_ref[...], w_ref[...], preferred_element_type=jnp.float32)
        + b_ref[...]
    ).astype(o_ref.dtype)


def fc_tanh(y_flat, w_fc, b_fc, *, max_rows=512):
    """tanh(y @ w_fc^T + b_fc). y_flat: (N, H); w_fc: (C, H) PyTorch layout. -> (N, C)."""
    N, H = y_flat.shape
    C = w_fc.shape[0]
    Cp = _round_up(C, 128)   # lane-dense output: avoid masked partial stores at C=4
    w_t = jnp.zeros((H, Cp), jnp.float32).at[:, :C].set(jnp.transpose(w_fc))
    b_row = jnp.zeros((1, Cp), jnp.float32).at[:, :C].set(b_fc)

    tile = min(max_rows, _round_up(N, 8))
    n_pad = _round_up(N, tile)
    y_in = jnp.pad(y_flat, ((0, n_pad - N), (0, 0))) if n_pad != N else y_flat

    out = pl.pallas_call(
        _fc_tanh_kernel,
        out_shape=jax.ShapeDtypeStruct((n_pad, Cp), jnp.float32),
        grid=(n_pad // tile,),
        in_specs=[
            pl.BlockSpec((tile, H), lambda i: (i, 0)),
            pl.BlockSpec((H, Cp), lambda i: (0, 0)),
            pl.BlockSpec((1, Cp), lambda i: (0, 0)),
        ],
        out_specs=pl.BlockSpec((tile, Cp), lambda i: (i, 0)),
        compiler_params=pltpu.CompilerParams(
            dimension_semantics=("parallel",),
            vmem_limit_bytes=_VMEM_LIMIT),
    )(y_in, w_t, b_row)
    return out[:N, :C]


# -----------------------------------------------------------------------------
# Parameter init (deterministic, PyTorch-style uniform(-1/sqrt(H), 1/sqrt(H)))
# -----------------------------------------------------------------------------
def init_params(key, input_size, hidden_size, num_layers, num_classes):
    stdv = 1.0 / jnp.sqrt(hidden_size)
    params = {"lstm": [], "fc": {}}
    for layer in range(num_layers):
        d_in = input_size if layer == 0 else hidden_size
        key, k1, k2, k3, k4 = jax.random.split(key, 5)
        params["lstm"].append({
            "w_ih": jax.random.uniform(k1, (4 * hidden_size, d_in),
                                       jnp.float32, -stdv, stdv),
            "w_hh": jax.random.uniform(k2, (4 * hidden_size, hidden_size),
                                       jnp.float32, -stdv, stdv),
            "b_ih": jax.random.uniform(k3, (4 * hidden_size,),
                                       jnp.float32, -stdv, stdv),
            "b_hh": jax.random.uniform(k4, (4 * hidden_size,),
                                       jnp.float32, -stdv, stdv),
        })
    key, k5, k6 = jax.random.split(key, 3)
    params["fc"]["w"] = jax.random.uniform(k5, (num_classes, hidden_size),
                                           jnp.float32, -stdv, stdv)
    params["fc"]["b"] = jax.random.uniform(k6, (num_classes,),
                                           jnp.float32, -stdv, stdv)
    return params


# -----------------------------------------------------------------------------
# Full forward (matches task_LSTM.forward)
# -----------------------------------------------------------------------------
@jax.jit
def task_lstm_forward(params, x_btd):
    """x_btd: (B, T, input_size). Returns (out (B, T, C), hidden_info (B, H))."""
    x = jnp.transpose(x_btd, (1, 0, 2)).astype(jnp.float32)   # (T, B, D)
    for lp in params["lstm"]:
        x = lstm_layer(x, lp["w_ih"], lp["w_hh"], lp["b_ih"], lp["b_hh"])
    T, B, H = x.shape
    hidden_info = x[T - 1]                                    # == out[:, -1, :]
    out_flat = fc_tanh(x.reshape(T * B, H), params["fc"]["w"], params["fc"]["b"])
    out = jnp.transpose(out_flat.reshape(T, B, -1), (1, 0, 2))  # (B, T, C)
    return out, hidden_info


# -----------------------------------------------------------------------------
# Pure-JAX reference for verification
# -----------------------------------------------------------------------------
def reference_forward(params, x_btd):
    x = jnp.transpose(x_btd, (1, 0, 2)).astype(jnp.float32)   # (T, B, D)
    B = x.shape[1]
    H = params["lstm"][0]["w_hh"].shape[1]
    for lp in params["lstm"]:
        def step(carry, x_t, lp=lp):
            h, c = carry
            g = x_t @ lp["w_ih"].T + lp["b_ih"] + h @ lp["w_hh"].T + lp["b_hh"]
            i = jax.nn.sigmoid(g[:, 0 * H:1 * H])
            f = jax.nn.sigmoid(g[:, 1 * H:2 * H])
            gg = jnp.tanh(g[:, 2 * H:3 * H])
            o = jax.nn.sigmoid(g[:, 3 * H:4 * H])
            c = f * c + i * gg
            h = o * jnp.tanh(c)
            return (h, c), h
        init = (jnp.zeros((B, H), jnp.float32), jnp.zeros((B, H), jnp.float32))
        _, x = jax.lax.scan(step, init, x)
    hidden_info = x[-1]
    out = jnp.tanh(x @ params["fc"]["w"].T + params["fc"]["b"])
    return jnp.transpose(out, (1, 0, 2)), hidden_info


if __name__ == "__main__":
    # Small shapes consistent with the module
    B, T = 2, 8
    input_size, hidden_size, num_layers, num_classes = 16, 32, 2, 4

    key = jax.random.PRNGKey(0)
    key, kx, kp = jax.random.split(key, 3)
    x = jax.random.normal(kx, (B, T, input_size), jnp.float32)
    params = init_params(kp, input_size, hidden_size, num_layers, num_classes)

    out, hidden_info = task_lstm_forward(params, x)
    out = jax.block_until_ready(out)
    hidden_info = jax.block_until_ready(hidden_info)

    ref_out, ref_hidden = reference_forward(params, x)
    assert out.shape == (B, T, num_classes)
    assert hidden_info.shape == (B, hidden_size)
    # Both paths use default (bf16-class) MXU precision per the perf review, so the
    # tolerance is bf16-class rather than the 1e-5 used with Precision.HIGHEST.
    assert jnp.allclose(out, ref_out, atol=2e-2, rtol=2e-2)
    assert jnp.allclose(hidden_info, ref_hidden, atol=2e-2, rtol=2e-2)

    print("KERNEL_OK")
</pallas_src>

<mosaic_0001>
module attributes {stable_mosaic.version = 11 : i64} {
  func.func @_matmul_bias_kernel(%arg0: i32, %arg1: memref<16x16xf32, #tpu.memory_space<vmem>>, %arg2: memref<16x128xf32, #tpu.memory_space<vmem>>, %arg3: memref<1x128xf32, #tpu.memory_space<vmem>>, %arg4: memref<16x128xf32, #tpu.memory_space<vmem>>) attributes {dimension_semantics = [#tpu.dimension_semantics<parallel>], iteration_bounds = array<i64: 1>, scalar_prefetch = 0 : i64, scratch_operands = 0 : i64, tpu.core_type = #tpu.core_type<tc>, window_params = [{transform_indices = @transform_0, window_bounds = array<i64: 16, 16>}, {pipeline_mode = #tpu.pipeline_mode<synchronous>, transform_indices = @transform_1, window_bounds = array<i64: 16, 128>}, {pipeline_mode = #tpu.pipeline_mode<synchronous>, transform_indices = @transform_2, window_bounds = array<i64: 1, 128>}, {transform_indices = @transform_3, window_bounds = array<i64: 16, 128>}]} {
    %c0 = arith.constant 0 : index
    %c0_0 = arith.constant 0 : index
    %0 = vector.load %arg1[%c0, %c0_0] : memref<16x16xf32, #tpu.memory_space<vmem>>, vector<16x16xf32>
    %c0_1 = arith.constant 0 : index
    %c0_2 = arith.constant 0 : index
    %1 = vector.load %arg2[%c0_1, %c0_2] : memref<16x128xf32, #tpu.memory_space<vmem>>, vector<16x128xf32>
    %cst = arith.constant dense<0.000000e+00> : vector<16x128xf32>
    %2 = tpu.matmul %0, %1, %cst {dimension_numbers = #tpu.dot_dimension_numbers<[1], [0], [0], [1], [0, 0, 1, 1], [], []>} : vector<16x16xf32>, vector<16x128xf32>, vector<16x128xf32> -> vector<16x128xf32>
    %c0_3 = arith.constant 0 : index
    %c0_4 = arith.constant 0 : index
    %3 = vector.load %arg3[%c0_3, %c0_4] : memref<1x128xf32, #tpu.memory_space<vmem>>, vector<1x128xf32>
    %4 = vector.broadcast %3 : vector<1x128xf32> to vector<16x128xf32>
    %5 = arith.addf %2, %4 : vector<16x128xf32>
    %c0_5 = arith.constant 0 : index
    %c0_6 = arith.constant 0 : index
    %6 = vector.load %arg4[%c0_5, %c0_6] : memref<16x128xf32, #tpu.memory_space<vmem>>, vector<16x128xf32>
    tpu.vector_store %arg4[%c0_5, %c0_6], %5 {strides = array<i32>} : memref<16x128xf32, #tpu.memory_space<vmem>>, vector<16x128xf32>,
    return
  }
  func.func @transform_0(%arg0: i32) -> (i32, i32) {
    %c0_i32 = arith.constant 0 : i32
    %c0_i32_0 = arith.constant 0 : i32
    return %arg0, %c0_i32 : i32, i32
  }
  func.func @transform_1(%arg0: i32) -> (i32, i32) {
    %c0_i32 = arith.constant 0 : i32
    %c0_i32_0 = arith.constant 0 : i32
    %c0_i32_1 = arith.constant 0 : i32
    return %c0_i32, %c0_i32_0 : i32, i32
  }
  func.func @transform_2(%arg0: i32) -> (i32, i32) {
    %c0_i32 = arith.constant 0 : i32
    %c0_i32_0 = arith.constant 0 : i32
    %c0_i32_1 = arith.constant 0 : i32
    return %c0_i32, %c0_i32_0 : i32, i32
  }
  func.func @transform_3(%arg0: i32) -> (i32, i32) {
    %c0_i32 = arith.constant 0 : i32
    %c0_i32_0 = arith.constant 0 : i32
    return %arg0, %c0_i32 : i32, i32
  }
}

module attributes {stable_mosaic.version = 11 : i64} {
  func.func @_matmul_bias_kernel(%arg0: i32, %arg1: memref<16x32xf32, #tpu.memory_space<vmem>>, %arg2: memref<32x128xf32, #tpu.memory_space<vmem>>, %arg3: memref<1x128xf32, #tpu.memory_space<vmem>>, %arg4: memref<16x128xf32, #tpu.memory_space<vmem>>) attributes {dimension_semantics = [#tpu.dimension_semantics<parallel>], iteration_bounds = array<i64: 1>, scalar_prefetch = 0 : i64, scratch_operands = 0 : i64, tpu.core_type = #tpu.core_type<tc>, window_params = [{transform_indices = @transform_0, window_bounds = array<i64: 16, 32>}, {pipeline_mode = #tpu.pipeline_mode<synchronous>, transform_indices = @transform_1, window_bounds = array<i64: 32, 128>}, {pipeline_mode = #tpu.pipeline_mode<synchronous>, transform_indices = @transform_2, window_bounds = array<i64: 1, 128>}, {transform_indices = @transform_3, window_bounds = array<i64: 16, 128>}]} {
    %c0 = arith.constant 0 : index
    %c0_0 = arith.constant 0 : index
    %0 = vector.load %arg1[%c0, %c0_0] : memref<16x32xf32, #tpu.memory_space<vmem>>, vector<16x32xf32>
    %c0_1 = arith.constant 0 : index
    %c0_2 = arith.constant 0 : index
    %1 = vector.load %arg2[%c0_1, %c0_2] : memref<32x128xf32, #tpu.memory_space<vmem>>, vector<32x128xf32>
    %cst = arith.constant dense<0.000000e+00> : vector<16x128xf32>
    %2 = tpu.matmul %0, %1, %cst {dimension_numbers = #tpu.dot_dimension_numbers<[1], [0], [0], [1], [0, 0, 1, 1], [], []>} : vector<16x32xf32>, vector<32x128xf32>, vector<16x128xf32> -> vector<16x128xf32>
    %c0_3 = arith.constant 0 : index
    %c0_4 = arith.constant 0 : index
    %3 = vector.load %arg3[%c0_3, %c0_4] : memref<1x128xf32, #tpu.memory_space<vmem>>, vector<1x128xf32>
    %4 = vector.broadcast %3 : vector<1x128xf32> to vector<16x128xf32>
    %5 = arith.addf %2, %4 : vector<16x128xf32>
    %c0_5 = arith.constant 0 : index
    %c0_6 = arith.constant 0 : index
    %6 = vector.load %arg4[%c0_5, %c0_6] : memref<16x128xf32, #tpu.memory_space<vmem>>, vector<16x128xf32>
    tpu.vector_store %arg4[%c0_5, %c0_6], %5 {strides = array<i32>} : memref<16x128xf32, #tpu.memory_space<vmem>>, vector<16x128xf32>,
    return
  }
  func.func @transform_0(%arg0: i32) -> (i32, i32) {
    %c0_i32 = arith.constant 0 : i32
    %c0_i32_0 = arith.constant 0 : i32
    return %arg0, %c0_i32 : i32, i32
  }
  func.func @transform_1(%arg0: i32) -> (i32, i32) {
    %c0_i32 = arith.constant 0 : i32
    %c0_i32_0 = arith.constant 0 : i32
    %c0_i32_1 = arith.constant 0 : i32
    return %c0_i32, %c0_i32_0 : i32, i32
  }
  func.func @transform_2(%arg0: i32) -> (i32, i32) {
    %c0_i32 = arith.constant 0 : i32
    %c0_i32_0 = arith.constant 0 : i32
    %c0_i32_1 = arith.constant 0 : i32
    return %c0_i32, %c0_i32_0 : i32, i32
  }
  func.func @transform_3(%arg0: i32) -> (i32, i32) {
    %c0_i32 = arith.constant 0 : i32
    %c0_i32_0 = arith.constant 0 : i32
    return %arg0, %c0_i32 : i32, i32
  }
}

module attributes {stable_mosaic.version = 11 : i64} {
  func.func @_lstm_rec_kernel(%arg0: i32, %arg1: memref<8x2x128xf32, #tpu.memory_space<vmem>>, %arg2: memref<32x128xf32, #tpu.memory_space<vmem>>, %arg3: memref<8x2x32xf32, #tpu.memory_space<vmem>>, %arg4: memref<2x32xf32, #tpu.memory_space<vmem>>, %arg5: memref<2x32xf32, #tpu.memory_space<vmem>>) attributes {dimension_semantics = [#tpu.dimension_semantics<arbitrary>], iteration_bounds = array<i64: 1>, scalar_prefetch = 0 : i64, scratch_operands = 2 : i64, tpu.core_type = #tpu.core_type<tc>, window_params = [{transform_indices = @transform_0, window_bounds = array<i64: 8, 2, 128>}, {pipeline_mode = #tpu.pipeline_mode<synchronous>, transform_indices = @transform_1, window_bounds = array<i64: 32, 128>}, {transform_indices = @transform_2, window_bounds = array<i64: 8, 2, 32>}]} {
    %c0_i32 = arith.constant 0 : i32
    %0 = arith.cmpi eq, %arg0, %c0_i32 : i32
    %1 = arith.extui %0 : i1 to i32
    %c0_i32_0 = arith.constant 0 : i32
    %2 = arith.cmpi ne, %1, %c0_i32_0 : i32
    scf.if %2 {
      %cst_72 = arith.constant 0.000000e+00 : f32
      %215 = vector.broadcast %cst_72 : f32 to vector<2x32xf32>
      %c0_73 = arith.constant 0 : index
      %c0_74 = arith.constant 0 : index
      %216 = vector.load %arg4[%c0_73, %c0_74] : memref<2x32xf32, #tpu.memory_space<vmem>>, vector<2x32xf32>
      tpu.vector_store %arg4[%c0_73, %c0_74], %215 {strides = array<i32>} : memref<2x32xf32, #tpu.memory_space<vmem>>, vector<2x32xf32>,
      %cst_75 = arith.constant 0.000000e+00 : f32
      %217 = vector.broadcast %cst_75 : f32 to vector<2x32xf32>
      %c0_76 = arith.constant 0 : index
      %c0_77 = arith.constant 0 : index
      %218 = vector.load %arg5[%c0_76, %c0_77] : memref<2x32xf32, #tpu.memory_space<vmem>>, vector<2x32xf32>
      tpu.vector_store %arg5[%c0_76, %c0_77], %217 {strides = array<i32>} : memref<2x32xf32, #tpu.memory_space<vmem>>, vector<2x32xf32>,
    } else {
    }
    %c0 = arith.constant 0 : index
    %c0_1 = arith.constant 0 : index
    %3 = vector.load %arg4[%c0, %c0_1] : memref<2x32xf32, #tpu.memory_space<vmem>>, vector<2x32xf32>
    %c0_2 = arith.constant 0 : index
    %c0_3 = arith.constant 0 : index
    %4 = vector.load %arg5[%c0_2, %c0_3] : memref<2x32xf32, #tpu.memory_space<vmem>>, vector<2x32xf32>
    %c0_i32_4 = arith.constant 0 : i32
    %5 = arith.index_cast %c0_i32_4 : i32 to index
    %c0_5 = arith.constant 0 : index
    %c0_6 = arith.constant 0 : index
    %6 = vector.load %arg1[%5, %c0_5, %c0_6] : memref<8x2x128xf32, #tpu.memory_space<vmem>>, vector<1x2x128xf32>
    %7 = vector.shape_cast %6 : vector<1x2x128xf32> to vector<2x128xf32>
    %c0_7 = arith.constant 0 : index
    %c0_8 = arith.constant 0 : index
    %8 = vector.load %arg2[%c0_7, %c0_8] : memref<32x128xf32, #tpu.memory_space<vmem>>, vector<32x128xf32>
    %cst = arith.constant dense<0.000000e+00> : vector<2x128xf32>
    %9 = tpu.matmul %3, %8, %cst {dimension_numbers = #tpu.dot_dimension_numbers<[1], [0], [0], [1], [0, 0, 1, 1], [], []>} : vector<2x32xf32>, vector<32x128xf32>, vector<2x128xf32> -> vector<2x128xf32>
    %10 = arith.addf %7, %9 : vector<2x128xf32>
    %11 = vector.extract_strided_slice %10 {offsets = [0, 0], sizes = [2, 96], strides = [1, 1]} : vector<2x128xf32> to vector<2x96xf32>
    %12 = arith.negf %11 : vector<2x96xf32>
    %13 = math.exp %12 : vector<2x96xf32>
    %cst_9 = arith.constant 1.000000e+00 : f32
    %14 = vector.broadcast %cst_9 : f32 to vector<2x96xf32>
    %15 = arith.addf %14, %13 : vector<2x96xf32>
    %16 = arith.divf %14, %15 : vector<2x96xf32>
    %17 = vector.extract_strided_slice %10 {offsets = [0, 96], sizes = [2, 32], strides = [1, 1]} : vector<2x128xf32> to vector<2x32xf32>
    %18 = math.tanh %17 : vector<2x32xf32>
    %19 = vector.extract_strided_slice %16 {offsets = [0, 0], sizes = [2, 32], strides = [1, 1]} : vector<2x96xf32> to vector<2x32xf32>
    %20 = vector.extract_strided_slice %16 {offsets = [0, 32], sizes = [2, 32], strides = [1, 1]} : vector<2x96xf32> to vector<2x32xf32>
    %21 = vector.extract_strided_slice %16 {offsets = [0, 64], sizes = [2, 32], strides = [1, 1]} : vector<2x96xf32> to vector<2x32xf32>
    %22 = arith.mulf %20, %4 : vector<2x32xf32>
    %23 = arith.mulf %19, %18 : vector<2x32xf32>
    %24 = arith.addf %22, %23 : vector<2x32xf32>
    %25 = math.tanh %24 : vector<2x32xf32>
    %26 = arith.mulf %21, %25 : vector<2x32xf32>
    %27 = arith.index_cast %c0_i32_4 : i32 to index
    %c0_10 = arith.constant 0 : index
    %c0_11 = arith.constant 0 : index
    %28 = vector.load %arg3[%27, %c0_10, %c0_11] : memref<8x2x32xf32, #tpu.memory_space<vmem>>, vector<1x2x32xf32>
    %29 = vector.shape_cast %28 : vector<1x2x32xf32> to vector<2x32xf32>
    %30 = vector.shape_cast %26 : vector<2x32xf32> to vector<1x2x32xf32>
    tpu.vector_store %arg3[%27, %c0_10, %c0_11], %30 {strides = array<i32>} : memref<8x2x32xf32, #tpu.memory_space<vmem>>, vector<1x2x32xf32>,
    %c1_i32 = arith.constant 1 : i32
    %31 = arith.index_cast %c1_i32 : i32 to index
    %c0_12 = arith.constant 0 : index
    %c0_13 = arith.constant 0 : index
    %32 = vector.load %arg1[%31, %c0_12, %c0_13] : memref<8x2x128xf32, #tpu.memory_space<vmem>>, vector<1x2x128xf32>
    %33 = vector.shape_cast %32 : vector<1x2x128xf32> to vector<2x128xf32>
    %c0_14 = arith.constant 0 : index
    %c0_15 = arith.constant 0 : index
    %34 = vector.load %arg2[%c0_14, %c0_15] : memref<32x128xf32, #tpu.memory_space<vmem>>, vector<32x128xf32>
    %cst_16 = arith.constant dense<0.000000e+00> : vector<2x128xf32>
    %35 = tpu.matmul %26, %34, %cst_16 {dimension_numbers = #tpu.dot_dimension_numbers<[1], [0], [0], [1], [0, 0, 1, 1], [], []>} : vector<2x32xf32>, vector<32x128xf32>, vector<2x128xf32> -> vector<2x128xf32>
    %36 = arith.addf %33, %35 : vector<2x128xf32>
    %37 = vector.extract_strided_slice %36 {offsets = [0, 0], sizes = [2, 96], strides = [1, 1]} : vector<2x128xf32> to vector<2x96xf32>
    %38 = arith.negf %37 : vector<2x96xf32>
    %39 = math.exp %38 : vector<2x96xf32>
    %cst_17 = arith.constant 1.000000e+00 : f32
    %40 = vector.broadcast %cst_17 : f32 to vector<2x96xf32>
    %41 = arith.addf %40, %39 : vector<2x96xf32>
    %42 = arith.divf %40, %41 : vector<2x96xf32>
    %43 = vector.extract_strided_slice %36 {offsets = [0, 96], sizes = [2, 32], strides = [1, 1]} : vector<2x128xf32> to vector<2x32xf32>
    %44 = math.tanh %43 : vector<2x32xf32>
    %45 = vector.extract_strided_slice %42 {offsets = [0, 0], sizes = [2, 32], strides = [1, 1]} : vector<2x96xf32> to vector<2x32xf32>
    %46 = vector.extract_strided_slice %42 {offsets = [0, 32], sizes = [2, 32], strides = [1, 1]} : vector<2x96xf32> to vector<2x32xf32>
    %47 = vector.extract_strided_slice %42 {offsets = [0, 64], sizes = [2, 32], strides = [1, 1]} : vector<2x96xf32> to vector<2x32xf32>
    %48 = arith.mulf %46, %24 : vector<2x32xf32>
    %49 = arith.mulf %45, %44 : vector<2x32xf32>
    %50 = arith.addf %48, %49 : vector<2x32xf32>
    %51 = math.tanh %50 : vector<2x32xf32>
    %52 = arith.mulf %47, %51 : vector<2x32xf32>
    %53 = arith.index_cast %c1_i32 : i32 to index
    %c0_18 = arith.constant 0 : index
    %c0_19 = arith.constant 0 : index
    %54 = vector.load %arg3[%53, %c0_18, %c0_19] : memref<8x2x32xf32, #tpu.memory_space<vmem>>, vector<1x2x32xf32>
    %55 = vector.shape_cast %54 : vector<1x2x32xf32> to vector<2x32xf32>
    %56 = vector.shape_cast %52 : vector<2x32xf32> to vector<1x2x32xf32>
    tpu.vector_store %arg3[%53, %c0_18, %c0_19], %56 {strides = array<i32>} : memref<8x2x32xf32, #tpu.memory_space<vmem>>, vector<1x2x32xf32>,
    %c2_i32 = arith.constant 2 : i32
    %57 = arith.index_cast %c2_i32 : i32 to index
    %c0_20 = arith.constant 0 : index
    %c0_21 = arith.constant 0 : index
    %58 = vector.load %arg1[%57, %c0_20, %c0_21] : memref<8x2x128xf32, #tpu.memory_space<vmem>>, vector<1x2x128xf32>
    %59 = vector.shape_cast %58 : vector<1x2x128xf32> to vector<2x128xf32>
    %c0_22 = arith.constant 0 : index
    %c0_23 = arith.constant 0 : index
    %60 = vector.load %arg2[%c0_22, %c0_23] : memref<32x128xf32, #tpu.memory_space<vmem>>, vector<32x128xf32>
    %cst_24 = arith.constant dense<0.000000e+00> : vector<2x128xf32>
    %61 = tpu.matmul %52, %60, %cst_24 {dimension_numbers = #tpu.dot_dimension_numbers<[1], [0], [0], [1], [0, 0, 1, 1], [], []>} : vector<2x32xf32>, vector<32x128xf32>, vector<2x128xf32> -> vector<2x128xf32>
    %62 = arith.addf %59, %61 : vector<2x128xf32>
    %63 = vector.extract_strided_slice %62 {offsets = [0, 0], sizes = [2, 96], strides = [1, 1]} : vector<2x128xf32> to vector<2x96xf32>
    %64 = arith.negf %63 : vector<2x96xf32>
    %65 = math.exp %64 : vector<2x96xf32>
    %cst_25 = arith.constant 1.000000e+00 : f32
    %66 = vector.broadcast %cst_25 : f32 to vector<2x96xf32>
    %67 = arith.addf %66, %65 : vector<2x96xf32>
    %68 = arith.divf %66, %67 : vector<2x96xf32>
    %69 = vector.extract_strided_slice %62 {offsets = [0, 96], sizes = [2, 32], strides = [1, 1]} : vector<2x128xf32> to vector<2x32xf32>
    %70 = math.tanh %69 : vector<2x32xf32>
    %71 = vector.extract_strided_slice %68 {offsets = [0, 0], sizes = [2, 32], strides = [1, 1]} : vector<2x96xf32> to vector<2x32xf32>
    %72 = vector.extract_strided_slice %68 {offsets = [0, 32], sizes = [2, 32], strides = [1, 1]} : vector<2x96xf32> to vector<2x32xf32>
    %73 = vector.extract_strided_slice %68 {offsets = [0, 64], sizes = [2, 32], strides = [1, 1]} : vector<2x96xf32> to vector<2x32xf32>
    %74 = arith.mulf %72, %50 : vector<2x32xf32>
    %75 = arith.mulf %71, %70 : vector<2x32xf32>
    %76 = arith.addf %74, %75 : vector<2x32xf32>
    %77 = math.tanh %76 : vector<2x32xf32>
    %78 = arith.mulf %73, %77 : vector<2x32xf32>
    %79 = arith.index_cast %c2_i32 : i32 to index
    %c0_26 = arith.constant 0 : index
    %c0_27 = arith.constant 0 : index
    %80 = vector.load %arg3[%79, %c0_26, %c0_27] : memref<8x2x32xf32, #tpu.memory_space<vmem>>, vector<1x2x32xf32>
    %81 = vector.shape_cast %80 : vector<1x2x32xf32> to vector<2x32xf32>
    %82 = vector.shape_cast %78 : vector<2x32xf32> to vector<1x2x32xf32>
    tpu.vector_store %arg3[%79, %c0_26, %c0_27], %82 {strides = array<i32>} : memref<8x2x32xf32, #tpu.memory_space<vmem>>, vector<1x2x32xf32>,
    %c3_i32 = arith.constant 3 : i32
    %83 = arith.index_cast %c3_i32 : i32 to index
    %c0_28 = arith.constant 0 : index
    %c0_29 = arith.constant 0 : index
    %84 = vector.load %arg1[%83, %c0_28, %c0_29] : memref<8x2x128xf32, #tpu.memory_space<vmem>>, vector<1x2x128xf32>
    %85 = vector.shape_cast %84 : vector<1x2x128xf32> to vector<2x128xf32>
    %c0_30 = arith.constant 0 : index
    %c0_31 = arith.constant 0 : index
    %86 = vector.load %arg2[%c0_30, %c0_31] : memref<32x128xf32, #tpu.memory_space<vmem>>, vector<32x128xf32>
    %cst_32 = arith.constant dense<0.000000e+00> : vector<2x128xf32>
    %87 = tpu.matmul %78, %86, %cst_32 {dimension_numbers = #tpu.dot_dimension_numbers<[1], [0], [0], [1], [0, 0, 1, 1], [], []>} : vector<2x32xf32>, vector<32x128xf32>, vector<2x128xf32> -> vector<2x128xf32>
    %88 = arith.addf %85, %87 : vector<2x128xf32>
    %89 = vector.extract_strided_slice %88 {offsets = [0, 0], sizes = [2, 96], strides = [1, 1]} : vector<2x128xf32> to vector<2x96xf32>
    %90 = arith.negf %89 : vector<2x96xf32>
    %91 = math.exp %90 : vector<2x96xf32>
    %cst_33 = arith.constant 1.000000e+00 : f32
    %92 = vector.broadcast %cst_33 : f32 to vector<2x96xf32>
    %93 = arith.addf %92, %91 : vector<2x96xf32>
    %94 = arith.divf %92, %93 : vector<2x96xf32>
    %95 = vector.extract_strided_slice %88 {offsets = [0, 96], sizes = [2, 32], strides = [1, 1]} : vector<2x128xf32> to vector<2x32xf32>
    %96 = math.tanh %95 : vector<2x32xf32>
    %97 = vector.extract_strided_slice %94 {offsets = [0, 0], sizes = [2, 32], strides = [1, 1]} : vector<2x96xf32> to vector<2x32xf32>
    %98 = vector.extract_strided_slice %94 {offsets = [0, 32], sizes = [2, 32], strides = [1, 1]} : vector<2x96xf32> to vector<2x32xf32>
    %99 = vector.extract_strided_slice %94 {offsets = [0, 64], sizes = [2, 32], strides = [1, 1]} : vector<2x96xf32> to vector<2x32xf32>
    %100 = arith.mulf %98, %76 : vector<2x32xf32>
    %101 = arith.mulf %97, %96 : vector<2x32xf32>
    %102 = arith.addf %100, %101 : vector<2x32xf32>
    %103 = math.tanh %102 : vector<2x32xf32>
    %104 = arith.mulf %99, %103 : vector<2x32xf32>
    %105 = arith.index_cast %c3_i32 : i32 to index
    %c0_34 = arith.constant 0 : index
    %c0_35 = arith.constant 0 : index
    %106 = vector.load %arg3[%105, %c0_34, %c0_35] : memref<8x2x32xf32, #tpu.memory_space<vmem>>, vector<1x2x32xf32>
    %107 = vector.shape_cast %106 : vector<1x2x32xf32> to vector<2x32xf32>
    %108 = vector.shape_cast %104 : vector<2x32xf32> to vector<1x2x32xf32>
    tpu.vector_store %arg3[%105, %c0_34, %c0_35], %108 {strides = array<i32>} : memref<8x2x32xf32, #tpu.memory_space<vmem>>, vector<1x2x32xf32>,
    %c4_i32 = arith.constant 4 : i32
    %109 = arith.index_cast %c4_i32 : i32 to index
    %c0_36 = arith.constant 0 : index
    %c0_37 = arith.constant 0 : index
    %110 = vector.load %arg1[%109, %c0_36, %c0_37] : memref<8x2x128xf32, #tpu.memory_space<vmem>>, vector<1x2x128xf32>
    %111 = vector.shape_cast %110 : vector<1x2x128xf32> to vector<2x128xf32>
    %c0_38 = arith.constant 0 : index
    %c0_39 = arith.constant 0 : index
    %112 = vector.load %arg2[%c0_38, %c0_39] : memref<32x128xf32, #tpu.memory_space<vmem>>, vector<32x128xf32>
    %cst_40 = arith.constant dense<0.000000e+00> : vector<2x128xf32>
    %113 = tpu.matmul %104, %112, %cst_40 {dimension_numbers = #tpu.dot_dimension_numbers<[1], [0], [0], [1], [0, 0, 1, 1], [], []>} : vector<2x32xf32>, vector<32x128xf32>, vector<2x128xf32> -> vector<2x128xf32>
    %114 = arith.addf %111, %113 : vector<2x128xf32>
    %115 = vector.extract_strided_slice %114 {offsets = [0, 0], sizes = [2, 96], strides = [1, 1]} : vector<2x128xf32> to vector<2x96xf32>
    %116 = arith.negf %115 : vector<2x96xf32>
    %117 = math.exp %116 : vector<2x96xf32>
    %cst_41 = arith.constant 1.000000e+00 : f32
    %118 = vector.broadcast %cst_41 : f32 to vector<2x96xf32>
    %119 = arith.addf %118, %117 : vector<2x96xf32>
    %120 = arith.divf %118, %119 : vector<2x96xf32>
    %121 = vector.extract_strided_slice %114 {offsets = [0, 96], sizes = [2, 32], strides = [1, 1]} : vector<2x128xf32> to vector<2x32xf32>
    %122 = math.tanh %121 : vector<2x32xf32>
    %123 = vector.extract_strided_slice %120 {offsets = [0, 0], sizes = [2, 32], strides = [1, 1]} : vector<2x96xf32> to vector<2x32xf32>
    %124 = vector.extract_strided_slice %120 {offsets = [0, 32], sizes = [2, 32], strides = [1, 1]} : vector<2x96xf32> to vector<2x32xf32>
    %125 = vector.extract_strided_slice %120 {offsets = [0, 64], sizes = [2, 32], strides = [1, 1]} : vector<2x96xf32> to vector<2x32xf32>
    %126 = arith.mulf %124, %102 : vector<2x32xf32>
    %127 = arith.mulf %123, %122 : vector<2x32xf32>
    %128 = arith.addf %126, %127 : vector<2x32xf32>
    %129 = math.tanh %128 : vector<2x32xf32>
    %130 = arith.mulf %125, %129 : vector<2x32xf32>
    %131 = arith.index_cast %c4_i32 : i32 to index
    %c0_42 = arith.constant 0 : index
    %c0_43 = arith.constant 0 : index
    %132 = vector.load %arg3[%131, %c0_42, %c0_43] : memref<8x2x32xf32, #tpu.memory_space<vmem>>, vector<1x2x32xf32>
    %133 = vector.shape_cast %132 : vector<1x2x32xf32> to vector<2x32xf32>
    %134 = vector.shape_cast %130 : vector<2x32xf32> to vector<1x2x32xf32>
    tpu.vector_store %arg3[%131, %c0_42, %c0_43], %134 {strides = array<i32>} : memref<8x2x32xf32, #tpu.memory_space<vmem>>, vector<1x2x32xf32>,
    %c5_i32 = arith.constant 5 : i32
    %135 = arith.index_cast %c5_i32 : i32 to index
    %c0_44 = arith.constant 0 : index
    %c0_45 = arith.constant 0 : index
    %136 = vector.load %arg1[%135, %c0_44, %c0_45] : memref<8x2x128xf32, #tpu.memory_space<vmem>>, vector<1x2x128xf32>
    %137 = vector.shape_cast %136 : vector<1x2x128xf32> to vector<2x128xf32>
    %c0_46 = arith.constant 0 : index
    %c0_47 = arith.constant 0 : index
    %138 = vector.load %arg2[%c0_46, %c0_47] : memref<32x128xf32, #tpu.memory_space<vmem>>, vector<32x128xf32>
    %cst_48 = arith.constant dense<0.000000e+00> : vector<2x128xf32>
    %139 = tpu.matmul %130, %138, %cst_48 {dimension_numbers = #tpu.dot_dimension_numbers<[1], [0], [0], [1], [0, 0, 1, 1], [], []>} : vector<2x32xf32>, vector<32x128xf32>, vector<2x128xf32> -> vector<2x128xf32>
    %140 = arith.addf %137, %139 : vector<2x128xf32>
    %141 = vector.extract_strided_slice %140 {offsets = [0, 0], sizes = [2, 96], strides = [1, 1]} : vector<2x128xf32> to vector<2x96xf32>
    %142 = arith.negf %141 : vector<2x96xf32>
    %143 = math.exp %142 : vector<2x96xf32>
    %cst_49 = arith.constant 1.000000e+00 : f32
    %144 = vector.broadcast %cst_49 : f32 to vector<2x96xf32>
    %145 = arith.addf %144, %143 : vector<2x96xf32>
    %146 = arith.divf %144, %145 : vector<2x96xf32>
    %147 = vector.extract_strided_slice %140 {offsets = [0, 96], sizes = [2, 32], strides = [1, 1]} : vector<2x128xf32> to vector<2x32xf32>
    %148 = math.tanh %147 : vector<2x32xf32>
    %149 = vector.extract_strided_slice %146 {offsets = [0, 0], sizes = [2, 32], strides = [1, 1]} : vector<2x96xf32> to vector<2x32xf32>
    %150 = vector.extract_strided_slice %146 {offsets = [0, 32], sizes = [2, 32], strides = [1, 1]} : vector<2x96xf32> to vector<2x32xf32>
    %151 = vector.extract_strided_slice %146 {offsets = [0, 64], sizes = [2, 32], strides = [1, 1]} : vector<2x96xf32> to vector<2x32xf32>
    %152 = arith.mulf %150, %128 : vector<2x32xf32>
    %153 = arith.mulf %149, %148 : vector<2x32xf32>
    %154 = arith.addf %152, %153 : vector<2x32xf32>
    %155 = math.tanh %154 : vector<2x32xf32>
    %156 = arith.mulf %151, %155 : vector<2x32xf32>
    %157 = arith.index_cast %c5_i32 : i32 to index
    %c0_50 = arith.constant 0 : index
    %c0_51 = arith.constant 0 : index
    %158 = vector.load %arg3[%157, %c0_50, %c0_51] : memref<8x2x32xf32, #tpu.memory_space<vmem>>, vector<1x2x32xf32>
    %159 = vector.shape_cast %158 : vector<1x2x32xf32> to vector<2x32xf32>
    %160 = vector.shape_cast %156 : vector<2x32xf32> to vector<1x2x32xf32>
    tpu.vector_store %arg3[%157, %c0_50, %c0_51], %160 {strides = array<i32>} : memref<8x2x32xf32, #tpu.memory_space<vmem>>, vector<1x2x32xf32>,
    %c6_i32 = arith.constant 6 : i32
    %161 = arith.index_cast %c6_i32 : i32 to index
    %c0_52 = arith.constant 0 : index
    %c0_53 = arith.constant 0 : index
    %162 = vector.load %arg1[%161, %c0_52, %c0_53] : memref<8x2x128xf32, #tpu.memory_space<vmem>>, vector<1x2x128xf32>
    %163 = vector.shape_cast %162 : vector<1x2x128xf32> to vector<2x128xf32>
    %c0_54 = arith.constant 0 : index
    %c0_55 = arith.constant 0 : index
    %164 = vector.load %arg2[%c0_54, %c0_55] : memref<32x128xf32, #tpu.memory_space<vmem>>, vector<32x128xf32>
    %cst_56 = arith.constant dense<0.000000e+00> : vector<2x128xf32>
    %165 = tpu.matmul %156, %164, %cst_56 {dimension_numbers = #tpu.dot_dimension_numbers<[1], [0], [0], [1], [0, 0, 1, 1], [], []>} : vector<2x32xf32>, vector<32x128xf32>, vector<2x128xf32> -> vector<2x128xf32>
    %166 = arith.addf %163, %165 : vector<2x128xf32>
    %167 = vector.extract_strided_slice %166 {offsets = [0, 0], sizes = [2, 96], strides = [1, 1]} : vector<2x128xf32> to vector<2x96xf32>
    %168 = arith.negf %167 : vector<2x96xf32>
    %169 = math.exp %168 : vector<2x96xf32>
    %cst_57 = arith.constant 1.000000e+00 : f32
    %170 = vector.broadcast %cst_57 : f32 to vector<2x96xf32>
    %171 = arith.addf %170, %169 : vector<2x96xf32>
    %172 = arith.divf %170, %171 : vector<2x96xf32>
    %173 = vector.extract_strided_slice %166 {offsets = [0, 96], sizes = [2, 32], strides = [1, 1]} : vector<2x128xf32> to vector<2x32xf32>
    %174 = math.tanh %173 : vector<2x32xf32>
    %175 = vector.extract_strided_slice %172 {offsets = [0, 0], sizes = [2, 32], strides = [1, 1]} : vector<2x96xf32> to vector<2x32xf32>
    %176 = vector.extract_strided_slice %172 {offsets = [0, 32], sizes = [2, 32], strides = [1, 1]} : vector<2x96xf32> to vector<2x32xf32>
    %177 = vector.extract_strided_slice %172 {offsets = [0, 64], sizes = [2, 32], strides = [1, 1]} : vector<2x96xf32> to vector<2x32xf32>
    %178 = arith.mulf %176, %154 : vector<2x32xf32>
    %179 = arith.mulf %175, %174 : vector<2x32xf32>
    %180 = arith.addf %178, %179 : vector<2x32xf32>
    %181 = math.tanh %180 : vector<2x32xf32>
    %182 = arith.mulf %177, %181 : vector<2x32xf32>
    %183 = arith.index_cast %c6_i32 : i32 to index
    %c0_58 = arith.constant 0 : index
    %c0_59 = arith.constant 0 : index
    %184 = vector.load %arg3[%183, %c0_58, %c0_59] : memref<8x2x32xf32, #tpu.memory_space<vmem>>, vector<1x2x32xf32>
    %185 = vector.shape_cast %184 : vector<1x2x32xf32> to vector<2x32xf32>
    %186 = vector.shape_cast %182 : vector<2x32xf32> to vector<1x2x32xf32>
    tpu.vector_store %arg3[%183, %c0_58, %c0_59], %186 {strides = array<i32>} : memref<8x2x32xf32, #tpu.memory_space<vmem>>, vector<1x2x32xf32>,
    %c7_i32 = arith.constant 7 : i32
    %187 = arith.index_cast %c7_i32 : i32 to index
    %c0_60 = arith.constant 0 : index
    %c0_61 = arith.constant 0 : index
    %188 = vector.load %arg1[%187, %c0_60, %c0_61] : memref<8x2x128xf32, #tpu.memory_space<vmem>>, vector<1x2x128xf32>
    %189 = vector.shape_cast %188 : vector<1x2x128xf32> to vector<2x128xf32>
    %c0_62 = arith.constant 0 : index
    %c0_63 = arith.constant 0 : index
    %190 = vector.load %arg2[%c0_62, %c0_63] : memref<32x128xf32, #tpu.memory_space<vmem>>, vector<32x128xf32>
    %cst_64 = arith.constant dense<0.000000e+00> : vector<2x128xf32>
    %191 = tpu.matmul %182, %190, %cst_64 {dimension_numbers = #tpu.dot_dimension_numbers<[1], [0], [0], [1], [0, 0, 1, 1], [], []>} : vector<2x32xf32>, vector<32x128xf32>, vector<2x128xf32> -> vector<2x128xf32>
    %192 = arith.addf %189, %191 : vector<2x128xf32>
    %193 = vector.extract_strided_slice %192 {offsets = [0, 0], sizes = [2, 96], strides = [1, 1]} : vector<2x128xf32> to vector<2x96xf32>
    %194 = arith.negf %193 : vector<2x96xf32>
    %195 = math.exp %194 : vector<2x96xf32>
    %cst_65 = arith.constant 1.000000e+00 : f32
    %196 = vector.broadcast %cst_65 : f32 to vector<2x96xf32>
    %197 = arith.addf %196, %195 : vector<2x96xf32>
    %198 = arith.divf %196, %197 : vector<2x96xf32>
    %199 = vector.extract_strided_slice %192 {offsets = [0, 96], sizes = [2, 32], strides = [1, 1]} : vector<2x128xf32> to vector<2x32xf32>
    %200 = math.tanh %199 : vector<2x32xf32>
    %201 = vector.extract_strided_slice %198 {offsets = [0, 0], sizes = [2, 32], strides = [1, 1]} : vector<2x96xf32> to vector<2x32xf32>
    %202 = vector.extract_strided_slice %198 {offsets = [0, 32], sizes = [2, 32], strides = [1, 1]} : vector<2x96xf32> to vector<2x32xf32>
    %203 = vector.extract_strided_slice %198 {offsets = [0, 64], sizes = [2, 32], strides = [1, 1]} : vector<2x96xf32> to vector<2x32xf32>
    %204 = arith.mulf %202, %180 : vector<2x32xf32>
    %205 = arith.mulf %201, %200 : vector<2x32xf32>
    %206 = arith.addf %204, %205 : vector<2x32xf32>
    %207 = math.tanh %206 : vector<2x32xf32>
    %208 = arith.mulf %203, %207 : vector<2x32xf32>
    %209 = arith.index_cast %c7_i32 : i32 to index
    %c0_66 = arith.constant 0 : index
    %c0_67 = arith.constant 0 : index
    %210 = vector.load %arg3[%209, %c0_66, %c0_67] : memref<8x2x32xf32, #tpu.memory_space<vmem>>, vector<1x2x32xf32>
    %211 = vector.shape_cast %210 : vector<1x2x32xf32> to vector<2x32xf32>
    %212 = vector.shape_cast %208 : vector<2x32xf32> to vector<1x2x32xf32>
    tpu.vector_store %arg3[%209, %c0_66, %c0_67], %212 {strides = array<i32>} : memref<8x2x32xf32, #tpu.memory_space<vmem>>, vector<1x2x32xf32>,
    %c8_i32 = arith.constant 8 : i32
    %c0_68 = arith.constant 0 : index
    %c0_69 = arith.constant 0 : index
    %213 = vector.load %arg4[%c0_68, %c0_69] : memref<2x32xf32, #tpu.memory_space<vmem>>, vector<2x32xf32>
    tpu.vector_store %arg4[%c0_68, %c0_69], %208 {strides = array<i32>} : memref<2x32xf32, #tpu.memory_space<vmem>>, vector<2x32xf32>,
    %c0_70 = arith.constant 0 : index
    %c0_71 = arith.constant 0 : index
    %214 = vector.load %arg5[%c0_70, %c0_71] : memref<2x32xf32, #tpu.memory_space<vmem>>, vector<2x32xf32>
    tpu.vector_store %arg5[%c0_70, %c0_71], %206 {strides = array<i32>} : memref<2x32xf32, #tpu.memory_space<vmem>>, vector<2x32xf32>,
    return
  }
  func.func @transform_0(%arg0: i32) -> (i32, i32, i32) {
    %c0_i32 = arith.constant 0 : i32
    %c0_i32_0 = arith.constant 0 : i32
    %c0_i32_1 = arith.constant 0 : i32
    return %arg0, %c0_i32, %c0_i32_0 : i32, i32, i32
  }
  func.func @transform_1(%arg0: i32) -> (i32, i32) {
    %c0_i32 = arith.constant 0 : i32
    %c0_i32_0 = arith.constant 0 : i32
    %c0_i32_1 = arith.constant 0 : i32
    return %c0_i32, %c0_i32_0 : i32, i32
  }
  func.func @transform_2(%arg0: i32) -> (i32, i32, i32) {
    %c0_i32 = arith.constant 0 : i32
    %c0_i32_0 = arith.constant 0 : i32
    %c0_i32_1 = arith.constant 0 : i32
    return %arg0, %c0_i32, %c0_i32_0 : i32, i32, i32
  }
}

module attributes {stable_mosaic.version = 11 : i64} {
  func.func @_fc_tanh_kernel(%arg0: i32, %arg1: memref<16x32xf32, #tpu.memory_space<vmem>>, %arg2: memref<32x128xf32, #tpu.memory_space<vmem>>, %arg3: memref<1x128xf32, #tpu.memory_space<vmem>>, %arg4: memref<16x128xf32, #tpu.memory_space<vmem>>) attributes {dimension_semantics = [#tpu.dimension_semantics<parallel>], iteration_bounds = array<i64: 1>, scalar_prefetch = 0 : i64, scratch_operands = 0 : i64, tpu.core_type = #tpu.core_type<tc>, window_params = [{transform_indices = @transform_0, window_bounds = array<i64: 16, 32>}, {pipeline_mode = #tpu.pipeline_mode<synchronous>, transform_indices = @transform_1, window_bounds = array<i64: 32, 128>}, {pipeline_mode = #tpu.pipeline_mode<synchronous>, transform_indices = @transform_2, window_bounds = array<i64: 1, 128>}, {transform_indices = @transform_3, window_bounds = array<i64: 16, 128>}]} {
    %c0 = arith.constant 0 : index
    %c0_0 = arith.constant 0 : index
    %0 = vector.load %arg1[%c0, %c0_0] : memref<16x32xf32, #tpu.memory_space<vmem>>, vector<16x32xf32>
    %c0_1 = arith.constant 0 : index
    %c0_2 = arith.constant 0 : index
    %1 = vector.load %arg2[%c0_1, %c0_2] : memref<32x128xf32, #tpu.memory_space<vmem>>, vector<32x128xf32>
    %cst = arith.constant dense<0.000000e+00> : vector<16x128xf32>
    %2 = tpu.matmul %0, %1, %cst {dimension_numbers = #tpu.dot_dimension_numbers<[1], [0], [0], [1], [0, 0, 1, 1], [], []>} : vector<16x32xf32>, vector<32x128xf32>, vector<16x128xf32> -> vector<16x128xf32>
    %c0_3 = arith.constant 0 : index
    %c0_4 = arith.constant 0 : index
    %3 = vector.load %arg3[%c0_3, %c0_4] : memref<1x128xf32, #tpu.memory_space<vmem>>, vector<1x128xf32>
    %4 = vector.broadcast %3 : vector<1x128xf32> to vector<16x128xf32>
    %5 = arith.addf %2, %4 : vector<16x128xf32>
    %6 = math.tanh %5 : vector<16x128xf32>
    %c0_5 = arith.constant 0 : index
    %c0_6 = arith.constant 0 : index
    %7 = vector.load %arg4[%c0_5, %c0_6] : memref<16x128xf32, #tpu.memory_space<vmem>>, vector<16x128xf32>
    tpu.vector_store %arg4[%c0_5, %c0_6], %6 {strides = array<i32>} : memref<16x128xf32, #tpu.memory_space<vmem>>, vector<16x128xf32>,
    return
  }
  func.func @transform_0(%arg0: i32) -> (i32, i32) {
    %c0_i32 = arith.constant 0 : i32
    %c0_i32_0 = arith.constant 0 : i32
    return %arg0, %c0_i32 : i32, i32
  }
  func.func @transform_1(%arg0: i32) -> (i32, i32) {
    %c0_i32 = arith.constant 0 : i32
    %c0_i32_0 = arith.constant 0 : i32
    %c0_i32_1 = arith.constant 0 : i32
    return %c0_i32, %c0_i32_0 : i32, i32
  }
  func.func @transform_2(%arg0: i32) -> (i32, i32) {
    %c0_i32 = arith.constant 0 : i32
    %c0_i32_0 = arith.constant 0 : i32
    %c0_i32_1 = arith.constant 0 : i32
    return %c0_i32, %c0_i32_0 : i32, i32
  }
  func.func @transform_3(%arg0: i32) -> (i32, i32) {
    %c0_i32 = arith.constant 0 : i32
    %c0_i32_0 = arith.constant 0 : i32
    return %arg0, %c0_i32 : i32, i32
  }
}

</mosaic_0001>

<llo_original>
// kernel: task_lstm_forward.5
$region0: #{task_lstm_forward.5}
  #allocation0 [shape = 'u32[]', space=smem, size = 0x4, offset = 0x4, fixed_abs, tag = 'smem constant byte address 0x4 - core index']
  #allocation1 [shape = 'u32[144,128]{1,0:T(1,128)}', space=vmem, size = 0x12000, scoped, tag = 'internal scratch']
  %s0 = inlined_call_operand.vmem [shape: f32[16,16], index: 0, kind: input, shape index: {}]
  %s1 = inlined_call_operand.vmem [shape: f32[16,128], index: 1, kind: input, shape index: {}]
  %s2 = inlined_call_operand.vmem [shape: f32[1,128], index: 2, kind: input, shape index: {}]
  %s3 = inlined_call_operand.vmem [shape: f32[16,128], index: 3, kind: output, shape index: {}]
  %s4 = sld [smem:[#allocation0]]
  $region22: #{task_lstm_forward.5} parent=0
    _
  %s6 = ssub.s32 1, %s4
  %s7 = scalar_select 0, %s6, %s4
  // Predicated region
  $region2: #{task_lstm_forward.5} parent=0 // pred_check
    _
  $region3: #{task_lstm_forward.5} parent=0 // pred_check_branch
    %9 = sbr.rel (0) target = $region5
  $region4: #{task_lstm_forward.5} parent=0 // pred_region
    _
  $region5: #{task_lstm_forward.5} parent=0 // pred_fallthru
    _
  // Predicated region
  $region6: #{task_lstm_forward.5} parent=0 // pred_check
    _
  $region7: #{task_lstm_forward.5} parent=0 // pred_check_branch
    %11 = sbr.rel (0) target = $region9
  $region8: #{task_lstm_forward.5} parent=0 // pred_region
    _
  $region9: #{task_lstm_forward.5} parent=0 // pred_fallthru
    _
  // Predicated region
  $region10: #{task_lstm_forward.5} parent=0 // pred_check
    _
  $region11: #{task_lstm_forward.5} parent=0 // pred_check_branch
    %13 = sbr.rel (0) target = $region13
  $region12: #{task_lstm_forward.5} parent=0 // pred_region
    _
  $region13: #{task_lstm_forward.5} parent=0 // pred_fallthru
    _
  %v14 = vld [vmem:[%s0] sm:$0xff]
  %v15 = vld [vmem:[%s0 + $0x8] sm:$0xff]
  %v16 = vld [vmem:[%s1] sm:$0xff]
  %v17 = vld [vmem:[%s1 + $0x8] sm:$0xff]
  %v18 = vld [vmem:[%s2] sm:$0x1]
  %v20 = vlaneseq
  %v21 = vshrl.u32 %v20, 7
  %v22 = vsub.s32 0, %v21
  %v23 = vrot.slane %v18, %v22
  %vm25 = vcmask 130048
  %v27 = vsel %vm25, %v14, 0
  %v30 = vsel %vm25, %v15, 0
  %32 = vmatprep.subr.mxu0 0.0
  %33 = vmatpush1.msra.mxu0 %v16
  %34 = vmatprep.subr.mxu0 0.0
  %35 = vmatpush1.msra.mxu0 %v17
  %36 = vmatprep.subr.mxu0 0.0
  %37 = vmatpush1.msra.mxu0 0.0
  %38 = vmatprep.subr.mxu0 0.0
  %39 = vmatpush1.msra.mxu0 0.0
  %40 = vmatprep.subr.mxu0 0.0
  %41 = vmatpush1.msra.mxu0 0.0
  %42 = vmatprep.subr.mxu0 0.0
  %43 = vmatpush1.msra.mxu0 0.0
  %44 = vmatprep.subr.mxu0 0.0
  %45 = vmatpush1.msra.mxu0 0.0
  %46 = vmatprep.subr.mxu0 0.0
  %47 = vmatpush1.msra.mxu0 0.0
  %48 = vmatprep.subr.mxu0 0.0
  %49 = vmatpush1.msra.mxu0 0.0
  %50 = vmatprep.subr.mxu0 0.0
  %51 = vmatpush1.msra.mxu0 0.0
  %52 = vmatprep.subr.mxu0 0.0
  %53 = vmatpush1.msra.mxu0 0.0
  %54 = vmatprep.subr.mxu0 0.0
  %55 = vmatpush1.msra.mxu0 0.0
  %56 = vmatprep.subr.mxu0 0.0
  %57 = vmatpush1.msra.mxu0 0.0
  %58 = vmatprep.subr.mxu0 0.0
  %59 = vmatpush1.msra.mxu0 0.0
  %60 = vmatprep.subr.mxu0 0.0
  %61 = vmatpush1.msra.mxu0 0.0
  %62 = vmatprep.subr.mxu0 0.0
  %63 = vmatpush1.msra.mxu0 0.0
  %64 = vmatprep.subr.mxu0 0.0
  %65 = vmatpush1.msra.mxu0 0.0
  %66 = vmatprep.subr.mxu0 0.0
  %67 = vmatpush1.msra.mxu0 0.0
  %68 = vmatprep.subr.mxu0 0.0
  %69 = vmatpush1.msra.mxu0 0.0
  %70 = vmatprep.subr.mxu0 0.0
  %71 = vmatpush1.msra.mxu0 0.0
  %72 = vmatprep.subr.mxu0 0.0
  %73 = vmatpush1.msra.mxu0 0.0
  %74 = vmatprep.subr.mxu0 0.0
  %75 = vmatpush1.msra.mxu0 0.0
  %76 = vmatprep.subr.mxu0 0.0
  %77 = vmatpush1.msra.mxu0 0.0
  %78 = vmatprep.subr.mxu0 0.0
  %79 = vmatpush1.msra.mxu0 0.0
  %80 = vmatprep.subr.mxu0 0.0
  %81 = vmatpush1.msra.mxu0 0.0
  %82 = vmatprep.subr.mxu0 0.0
  %83 = vmatpush1.msra.mxu0 0.0
  %84 = vmatprep.subr.mxu0 0.0
  %85 = vmatpush1.msra.mxu0 0.0
  %86 = vmatprep.subr.mxu0 0.0
  %87 = vmatpush1.msra.mxu0 0.0
  %88 = vmatprep.subr.mxu0 0.0
  %89 = vmatpush1.msra.mxu0 0.0
  %90 = vmatprep.subr.mxu0 0.0
  %91 = vmatpush1.msra.mxu0 0.0
  %92 = vmatprep.subr.mxu0 0.0
  %93 = vmatpush1.msra.mxu0 0.0
  %94 = vmatprep.subr.mxu0 0.0
  %95 = vmatpush1.msra.mxu0 0.0
  %96 = vmatprep.mubr.f32.mxu0 0.0
  %97 = vmatmul.mubr.f32.gmra.mrb[0].mxu0 %v27
  %v98 = vpop.f32.mrb[0].mxu0
  %v99 = vadd.f32 %v23, %v98
  %v100 = vpop.f32.mrb[0].mxu0
  %101 = vmatprep.mubr.f32.mxu0 0.0
  %102 = vmatmul.mubr.f32.gmra.mrb[0].mxu0 %v30
  %v103 = vpop.f32.mrb[0].mxu0
  %v104 = vadd.f32 %v23, %v103
  %v105 = vpop.f32.mrb[0].mxu0
  %106 = vdwg.mxu0
  %107 = vst [vmem:[%s3] sm:$0xff] %v99
  %108 = vst [vmem:[%s3 + $0x8] sm:$0xff] %v104
  // Predicated region
  $region14: #{task_lstm_forward.5} parent=0 // pred_check
    _
  $region15: #{task_lstm_forward.5} parent=0 // pred_check_branch
    %110 = sbr.rel (0) target = $region17
  $region16: #{task_lstm_forward.5} parent=0 // pred_region
    _
  $region17: #{task_lstm_forward.5} parent=0 // pred_fallthru
    _
  // Predicated region
  $region18: #{task_lstm_forward.5} parent=0 // pred_check
    _
  $region19: #{task_lstm_forward.5} parent=0 // pred_check_branch
    %112 = sbr.rel (0) target = $region21
  $region20: #{task_lstm_forward.5} parent=0 // pred_region
    _
  $region21: #{task_lstm_forward.5} parent=0 // pred_fallthru
    _

// kernel: task_lstm_forward.7
$region0: #{task_lstm_forward.7}
  #allocation0 [shape = 'u32[]', space=smem, size = 0x4, offset = 0x4, fixed_abs, tag = 'smem constant byte address 0x4 - core index']
  #allocation1 [shape = 'u32[144,128]{1,0:T(1,128)}', space=vmem, size = 0x12000, scoped, tag = 'internal scratch']
  %s0 = inlined_call_operand.vmem [shape: f32[16,32], index: 0, kind: input, shape index: {}]
  %s1 = inlined_call_operand.vmem [shape: f32[32,128], index: 1, kind: input, shape index: {}]
  %s2 = inlined_call_operand.vmem [shape: f32[1,128], index: 2, kind: input, shape index: {}]
  %s3 = inlined_call_operand.vmem [shape: f32[16,128], index: 3, kind: output, shape index: {}]
  %s4 = sld [smem:[#allocation0]]
  $region22: #{task_lstm_forward.7} parent=0
    _
  %s6 = ssub.s32 1, %s4
  %s7 = scalar_select 0, %s6, %s4
  // Predicated region
  $region2: #{task_lstm_forward.7} parent=0 // pred_check
    _
  $region3: #{task_lstm_forward.7} parent=0 // pred_check_branch
    %9 = sbr.rel (0) target = $region5
  $region4: #{task_lstm_forward.7} parent=0 // pred_region
    _
  $region5: #{task_lstm_forward.7} parent=0 // pred_fallthru
    _
  // Predicated region
  $region6: #{task_lstm_forward.7} parent=0 // pred_check
    _
  $region7: #{task_lstm_forward.7} parent=0 // pred_check_branch
    %11 = sbr.rel (0) target = $region9
  $region8: #{task_lstm_forward.7} parent=0 // pred_region
    _
  $region9: #{task_lstm_forward.7} parent=0 // pred_fallthru
    _
  // Predicated region
  $region10: #{task_lstm_forward.7} parent=0 // pred_check
    _
  $region11: #{task_lstm_forward.7} parent=0 // pred_check_branch
    %13 = sbr.rel (0) target = $region13
  $region12: #{task_lstm_forward.7} parent=0 // pred_region
    _
  $region13: #{task_lstm_forward.7} parent=0 // pred_fallthru
    _
  %v14 = vld [vmem:[%s0] sm:$0xff]
  %v15 = vld [vmem:[%s0 + $0x8] sm:$0xff]
  %v16 = vld [vmem:[%s1] sm:$0xff]
  %v17 = vld [vmem:[%s1 + $0x8] sm:$0xff]
  %v18 = vld [vmem:[%s1 + $0x10] sm:$0xff]
  %v19 = vld [vmem:[%s1 + $0x18] sm:$0xff]
  %v20 = vld [vmem:[%s2] sm:$0x1]
  %v22 = vlaneseq
  %v23 = vshrl.u32 %v22, 7
  %v24 = vsub.s32 0, %v23
  %v25 = vrot.slane %v20, %v24
  %vm27 = vcmask 261120
  %v29 = vsel %vm27, %v14, 0
  %v32 = vsel %vm27, %v15, 0
  %34 = vmatprep.subr.mxu0 0.0
  %35 = vmatpush1.msra.mxu0 %v16
  %36 = vmatprep.subr.mxu0 0.0
  %37 = vmatpush1.msra.mxu0 %v17
  %38 = vmatprep.subr.mxu0 0.0
  %39 = vmatpush1.msra.mxu0 %v18
  %40 = vmatprep.subr.mxu0 0.0
  %41 = vmatpush1.msra.mxu0 %v19
  %42 = vmatprep.subr.mxu0 0.0
  %43 = vmatpush1.msra.mxu0 0.0
  %44 = vmatprep.subr.mxu0 0.0
  %45 = vmatpush1.msra.mxu0 0.0
  %46 = vmatprep.subr.mxu0 0.0
  %47 = vmatpush1.msra.mxu0 0.0
  %48 = vmatprep.subr.mxu0 0.0
  %49 = vmatpush1.msra.mxu0 0.0
  %50 = vmatprep.subr.mxu0 0.0
  %51 = vmatpush1.msra.mxu0 0.0
  %52 = vmatprep.subr.mxu0 0.0
  %53 = vmatpush1.msra.mxu0 0.0
  %54 = vmatprep.subr.mxu0 0.0
  %55 = vmatpush1.msra.mxu0 0.0
  %56 = vmatprep.subr.mxu0 0.0
  %57 = vmatpush1.msra.mxu0 0.0
  %58 = vmatprep.subr.mxu0 0.0
  %59 = vmatpush1.msra.mxu0 0.0
  %60 = vmatprep.subr.mxu0 0.0
  %61 = vmatpush1.msra.mxu0 0.0
  %62 = vmatprep.subr.mxu0 0.0
  %63 = vmatpush1.msra.mxu0 0.0
  %64 = vmatprep.subr.mxu0 0.0
  %65 = vmatpush1.msra.mxu0 0.0
  %66 = vmatprep.subr.mxu0 0.0
  %67 = vmatpush1.msra.mxu0 0.0
  %68 = vmatprep.subr.mxu0 0.0
  %69 = vmatpush1.msra.mxu0 0.0
  %70 = vmatprep.subr.mxu0 0.0
  %71 = vmatpush1.msra.mxu0 0.0
  %72 = vmatprep.subr.mxu0 0.0
  %73 = vmatpush1.msra.mxu0 0.0
  %74 = vmatprep.subr.mxu0 0.0
  %75 = vmatpush1.msra.mxu0 0.0
  %76 = vmatprep.subr.mxu0 0.0
  %77 = vmatpush1.msra.mxu0 0.0
  %78 = vmatprep.subr.mxu0 0.0
  %79 = vmatpush1.msra.mxu0 0.0
  %80 = vmatprep.subr.mxu0 0.0
  %81 = vmatpush1.msra.mxu0 0.0
  %82 = vmatprep.subr.mxu0 0.0
  %83 = vmatpush1.msra.mxu0 0.0
  %84 = vmatprep.subr.mxu0 0.0
  %85 = vmatpush1.msra.mxu0 0.0
  %86 = vmatprep.subr.mxu0 0.0
  %87 = vmatpush1.msra.mxu0 0.0
  %88 = vmatprep.subr.mxu0 0.0
  %89 = vmatpush1.msra.mxu0 0.0
  %90 = vmatprep.subr.mxu0 0.0
  %91 = vmatpush1.msra.mxu0 0.0
  %92 = vmatprep.subr.mxu0 0.0
  %93 = vmatpush1.msra.mxu0 0.0
  %94 = vmatprep.subr.mxu0 0.0
  %95 = vmatpush1.msra.mxu0 0.0
  %96 = vmatprep.subr.mxu0 0.0
  %97 = vmatpush1.msra.mxu0 0.0
  %98 = vmatprep.mubr.f32.mxu0 0.0
  %99 = vmatmul.mubr.f32.gmra.mrb[0].mxu0 %v29
  %v100 = vpop.f32.mrb[0].mxu0
  %v101 = vadd.f32 %v25, %v100
  %v102 = vpop.f32.mrb[0].mxu0
  %103 = vmatprep.mubr.f32.mxu0 0.0
  %104 = vmatmul.mubr.f32.gmra.mrb[0].mxu0 %v32
  %v105 = vpop.f32.mrb[0].mxu0
  %v106 = vadd.f32 %v25, %v105
  %v107 = vpop.f32.mrb[0].mxu0
  %108 = vdwg.mxu0
  %109 = vst [vmem:[%s3] sm:$0xff] %v101
  %110 = vst [vmem:[%s3 + $0x8] sm:$0xff] %v106
  // Predicated region
  $region14: #{task_lstm_forward.7} parent=0 // pred_check
    _
  $region15: #{task_lstm_forward.7} parent=0 // pred_check_branch
    %112 = sbr.rel (0) target = $region17
  $region16: #{task_lstm_forward.7} parent=0 // pred_region
    _
  $region17: #{task_lstm_forward.7} parent=0 // pred_fallthru
    _
  // Predicated region
  $region18: #{task_lstm_forward.7} parent=0 // pred_check
    _
  $region19: #{task_lstm_forward.7} parent=0 // pred_check_branch
    %114 = sbr.rel (0) target = $region21
  $region20: #{task_lstm_forward.7} parent=0 // pred_region
    _
  $region21: #{task_lstm_forward.7} parent=0 // pred_fallthru
    _

// kernel: task_lstm_forward.9
$region0: #{task_lstm_forward.9}
  #allocation0 [shape = 'u32[]', space=smem, size = 0x4, offset = 0x4, fixed_abs, tag = 'smem constant byte address 0x4 - core index']
  #allocation1 [shape = 'u32[144,128]{1,0:T(1,128)}', space=vmem, size = 0x12000, scoped, tag = 'internal scratch']
  %s0 = inlined_call_operand.vmem [shape: f32[16,32], index: 0, kind: input, shape index: {}]
  %s1 = inlined_call_operand.vmem [shape: f32[32,128], index: 1, kind: input, shape index: {}]
  %s2 = inlined_call_operand.vmem [shape: f32[1,128], index: 2, kind: input, shape index: {}]
  %s3 = inlined_call_operand.vmem [shape: f32[16,128], index: 3, kind: output, shape index: {}]
  %s4 = sld [smem:[#allocation0]]
  $region22: #{task_lstm_forward.9} parent=0
    _
  %s6 = ssub.s32 1, %s4
  %s7 = scalar_select 0, %s6, %s4
  // Predicated region
  $region2: #{task_lstm_forward.9} parent=0 // pred_check
    _
  $region3: #{task_lstm_forward.9} parent=0 // pred_check_branch
    %9 = sbr.rel (0) target = $region5
  $region4: #{task_lstm_forward.9} parent=0 // pred_region
    _
  $region5: #{task_lstm_forward.9} parent=0 // pred_fallthru
    _
  // Predicated region
  $region6: #{task_lstm_forward.9} parent=0 // pred_check
    _
  $region7: #{task_lstm_forward.9} parent=0 // pred_check_branch
    %11 = sbr.rel (0) target = $region9
  $region8: #{task_lstm_forward.9} parent=0 // pred_region
    _
  $region9: #{task_lstm_forward.9} parent=0 // pred_fallthru
    _
  // Predicated region
  $region10: #{task_lstm_forward.9} parent=0 // pred_check
    _
  $region11: #{task_lstm_forward.9} parent=0 // pred_check_branch
    %13 = sbr.rel (0) target = $region13
  $region12: #{task_lstm_forward.9} parent=0 // pred_region
    _
  $region13: #{task_lstm_forward.9} parent=0 // pred_fallthru
    _
  %v14 = vld [vmem:[%s0] sm:$0xff]
  %v15 = vld [vmem:[%s0 + $0x8] sm:$0xff]
  %v16 = vld [vmem:[%s1] sm:$0xff]
  %v17 = vld [vmem:[%s1 + $0x8] sm:$0xff]
  %v18 = vld [vmem:[%s1 + $0x10] sm:$0xff]
  %v19 = vld [vmem:[%s1 + $0x18] sm:$0xff]
  %v20 = vld [vmem:[%s2] sm:$0x1]
  %v22 = vlaneseq
  %v23 = vshrl.u32 %v22, 7
  %v24 = vsub.s32 0, %v23
  %v25 = vrot.slane %v20, %v24
  %vm27 = vcmask 261120
  %v29 = vsel %vm27, %v14, 0
  %v32 = vsel %vm27, %v15, 0
  %34 = vmatprep.subr.mxu0 0.0
  %35 = vmatpush1.msra.mxu0 %v16
  %36 = vmatprep.subr.mxu0 0.0
  %37 = vmatpush1.msra.mxu0 %v17
  %38 = vmatprep.subr.mxu0 0.0
  %39 = vmatpush1.msra.mxu0 %v18
  %40 = vmatprep.subr.mxu0 0.0
  %41 = vmatpush1.msra.mxu0 %v19
  %42 = vmatprep.subr.mxu0 0.0
  %43 = vmatpush1.msra.mxu0 0.0
  %44 = vmatprep.subr.mxu0 0.0
  %45 = vmatpush1.msra.mxu0 0.0
  %46 = vmatprep.subr.mxu0 0.0
  %47 = vmatpush1.msra.mxu0 0.0
  %48 = vmatprep.subr.mxu0 0.0
  %49 = vmatpush1.msra.mxu0 0.0
  %50 = vmatprep.subr.mxu0 0.0
  %51 = vmatpush1.msra.mxu0 0.0
  %52 = vmatprep.subr.mxu0 0.0
  %53 = vmatpush1.msra.mxu0 0.0
  %54 = vmatprep.subr.mxu0 0.0
  %55 = vmatpush1.msra.mxu0 0.0
  %56 = vmatprep.subr.mxu0 0.0
  %57 = vmatpush1.msra.mxu0 0.0
  %58 = vmatprep.subr.mxu0 0.0
  %59 = vmatpush1.msra.mxu0 0.0
  %60 = vmatprep.subr.mxu0 0.0
  %61 = vmatpush1.msra.mxu0 0.0
  %62 = vmatprep.subr.mxu0 0.0
  %63 = vmatpush1.msra.mxu0 0.0
  %64 = vmatprep.subr.mxu0 0.0
  %65 = vmatpush1.msra.mxu0 0.0
  %66 = vmatprep.subr.mxu0 0.0
  %67 = vmatpush1.msra.mxu0 0.0
  %68 = vmatprep.subr.mxu0 0.0
  %69 = vmatpush1.msra.mxu0 0.0
  %70 = vmatprep.subr.mxu0 0.0
  %71 = vmatpush1.msra.mxu0 0.0
  %72 = vmatprep.subr.mxu0 0.0
  %73 = vmatpush1.msra.mxu0 0.0
  %74 = vmatprep.subr.mxu0 0.0
  %75 = vmatpush1.msra.mxu0 0.0
  %76 = vmatprep.subr.mxu0 0.0
  %77 = vmatpush1.msra.mxu0 0.0
  %78 = vmatprep.subr.mxu0 0.0
  %79 = vmatpush1.msra.mxu0 0.0
  %80 = vmatprep.subr.mxu0 0.0
  %81 = vmatpush1.msra.mxu0 0.0
  %82 = vmatprep.subr.mxu0 0.0
  %83 = vmatpush1.msra.mxu0 0.0
  %84 = vmatprep.subr.mxu0 0.0
  %85 = vmatpush1.msra.mxu0 0.0
  %86 = vmatprep.subr.mxu0 0.0
  %87 = vmatpush1.msra.mxu0 0.0
  %88 = vmatprep.subr.mxu0 0.0
  %89 = vmatpush1.msra.mxu0 0.0
  %90 = vmatprep.subr.mxu0 0.0
  %91 = vmatpush1.msra.mxu0 0.0
  %92 = vmatprep.subr.mxu0 0.0
  %93 = vmatpush1.msra.mxu0 0.0
  %94 = vmatprep.subr.mxu0 0.0
  %95 = vmatpush1.msra.mxu0 0.0
  %96 = vmatprep.subr.mxu0 0.0
  %97 = vmatpush1.msra.mxu0 0.0
  %98 = vmatprep.mubr.f32.mxu0 0.0
  %99 = vmatmul.mubr.f32.gmra.mrb[0].mxu0 %v29
  %v100 = vpop.f32.mrb[0].mxu0
  %v101 = vadd.f32 %v25, %v100
  %v102 = vpop.f32.mrb[0].mxu0
  %103 = vmatprep.mubr.f32.mxu0 0.0
  %104 = vmatmul.mubr.f32.gmra.mrb[0].mxu0 %v32
  %v105 = vpop.f32.mrb[0].mxu0
  %v106 = vadd.f32 %v25, %v105
  %v107 = vpop.f32.mrb[0].mxu0
  %108 = vdwg.mxu0
  %v109 = vtanh.pop %v101
  %v110 = vtanh.pop %v106
  %111 = vst [vmem:[%s3] sm:$0xff] %v109
  %112 = vst [vmem:[%s3 + $0x8] sm:$0xff] %v110
  // Predicated region
  $region14: #{task_lstm_forward.9} parent=0 // pred_check
    _
  $region15: #{task_lstm_forward.9} parent=0 // pred_check_branch
    %114 = sbr.rel (0) target = $region17
  $region16: #{task_lstm_forward.9} parent=0 // pred_region
    _
  $region17: #{task_lstm_forward.9} parent=0 // pred_fallthru
    _
  // Predicated region
  $region18: #{task_lstm_forward.9} parent=0 // pred_check
    _
  $region19: #{task_lstm_forward.9} parent=0 // pred_check_branch
    %116 = sbr.rel (0) target = $region21
  $region20: #{task_lstm_forward.9} parent=0 // pred_region
    _
  $region21: #{task_lstm_forward.9} parent=0 // pred_fallthru
    _

// kernel: task_lstm_forward.6
$region0: #{task_lstm_forward.6}
  #allocation0 [shape = 'u32[]', space=smem, size = 0x4, offset = 0x4, fixed_abs, tag = 'smem constant byte address 0x4 - core index']
  #allocation1 [shape = 'u32[144,128]{1,0:T(1,128)}', space=vmem, size = 0x12000, scoped, tag = 'internal scratch']
  #allocation2 [shape = 'f32[2,32]{1,0:T(2,128)}', space=vmem, size = 0x400, scoped, tag = 'scratch operand']
  #allocation3 [shape = 'f32[2,32]{1,0:T(2,128)}', space=vmem, size = 0x400, scoped, tag = 'scratch operand']
  %s0 = inlined_call_operand.vmem [shape: f32[8,2,128], index: 0, kind: input, shape index: {}]
  %s1 = inlined_call_operand.vmem [shape: f32[32,128], index: 1, kind: input, shape index: {}]
  %s2 = inlined_call_operand.vmem [shape: f32[8,2,32], index: 2, kind: output, shape index: {}]
  %s3 = sld [smem:[#allocation0]]
  $region22: #{task_lstm_forward.6} parent=0
    _
  %s5 = ssub.s32 1, %s3
  %s6 = scalar_select 0, %s5, %s3
  // Predicated region
  $region2: #{task_lstm_forward.6} parent=0 // pred_check
    _
  $region3: #{task_lstm_forward.6} parent=0 // pred_check_branch
    %8 = sbr.rel (0) target = $region5
  $region4: #{task_lstm_forward.6} parent=0 // pred_region
    _
  $region5: #{task_lstm_forward.6} parent=0 // pred_fallthru
    _
  // Predicated region
  $region6: #{task_lstm_forward.6} parent=0 // pred_check
    _
  $region7: #{task_lstm_forward.6} parent=0 // pred_check_branch
    %10 = sbr.rel (0) target = $region9
  $region8: #{task_lstm_forward.6} parent=0 // pred_region
    _
  $region9: #{task_lstm_forward.6} parent=0 // pred_fallthru
    _
  %p11 = scmp.eq.s32.totalorder 0, 0
  // Predicated region
  $region10: #{task_lstm_forward.6} parent=0 // pred_check
    %p12 = pneg %p11
  $region11: #{task_lstm_forward.6} parent=0 // pred_check_branch
    %14 = sbr.rel (%p12) target = $region13
  $region12: #{task_lstm_forward.6} parent=0 // pred_region
    %vm15 = vcmask 254976
    %16 = vst.msk [vmem:[#allocation2] sm:$0x3] %vm15, 0.0
    %17 = vst.msk [vmem:[#allocation3] sm:$0x3] %vm15, 0.0
  $region13: #{task_lstm_forward.6} parent=0 // pred_fallthru
    _
  %v18 = vld [vmem:[#allocation2] sm:$0x3]
  %v19 = vld [vmem:[#allocation3] sm:$0x3]
  %v20 = vld [vmem:[%s0] sm:$0x3]
  %v21 = vld [vmem:[%s1] sm:$0xff]
  %v22 = vld [vmem:[%s1 + $0x8] sm:$0xff]
  %v23 = vld [vmem:[%s1 + $0x10] sm:$0xff]
  %v24 = vld [vmem:[%s1 + $0x18] sm:$0xff]
  %vm25 = vcmask 261120
  %v27 = vsel %vm25, %v18, 0
  %29 = vmatprep.subr.mxu0 0.0
  %30 = vmatpush1.msra.mxu0 %v21
  %31 = vmatprep.subr.mxu0 0.0
  %32 = vmatpush1.msra.mxu0 %v22
  %33 = vmatprep.subr.mxu0 0.0
  %34 = vmatpush1.msra.mxu0 %v23
  %35 = vmatprep.subr.mxu0 0.0
  %36 = vmatpush1.msra.mxu0 %v24
  %37 = vmatprep.subr.mxu0 0.0
  %38 = vmatpush1.msra.mxu0 0.0
  %39 = vmatprep.subr.mxu0 0.0
  %40 = vmatpush1.msra.mxu0 0.0
  %41 = vmatprep.subr.mxu0 0.0
  %42 = vmatpush1.msra.mxu0 0.0
  %43 = vmatprep.subr.mxu0 0.0
  %44 = vmatpush1.msra.mxu0 0.0
  %45 = vmatprep.subr.mxu0 0.0
  %46 = vmatpush1.msra.mxu0 0.0
  %47 = vmatprep.subr.mxu0 0.0
  %48 = vmatpush1.msra.mxu0 0.0
  %49 = vmatprep.subr.mxu0 0.0
  %50 = vmatpush1.msra.mxu0 0.0
  %51 = vmatprep.subr.mxu0 0.0
  %52 = vmatpush1.msra.mxu0 0.0
  %53 = vmatprep.subr.mxu0 0.0
  %54 = vmatpush1.msra.mxu0 0.0
  %55 = vmatprep.subr.mxu0 0.0
  %56 = vmatpush1.msra.mxu0 0.0
  %57 = vmatprep.subr.mxu0 0.0
  %58 = vmatpush1.msra.mxu0 0.0
  %59 = vmatprep.subr.mxu0 0.0
  %60 = vmatpush1.msra.mxu0 0.0
  %61 = vmatprep.subr.mxu0 0.0
  %62 = vmatpush1.msra.mxu0 0.0
  %63 = vmatprep.subr.mxu0 0.0
  %64 = vmatpush1.msra.mxu0 0.0
  %65 = vmatprep.subr.mxu0 0.0
  %66 = vmatpush1.msra.mxu0 0.0
  %67 = vmatprep.subr.mxu0 0.0
  %68 = vmatpush1.msra.mxu0 0.0
  %69 = vmatprep.subr.mxu0 0.0
  %70 = vmatpush1.msra.mxu0 0.0
  %71 = vmatprep.subr.mxu0 0.0
  %72 = vmatpush1.msra.mxu0 0.0
  %73 = vmatprep.subr.mxu0 0.0
  %74 = vmatpush1.msra.mxu0 0.0
  %75 = vmatprep.subr.mxu0 0.0
  %76 = vmatpush1.msra.mxu0 0.0
  %77 = vmatprep.subr.mxu0 0.0
  %78 = vmatpush1.msra.mxu0 0.0
  %79 = vmatprep.subr.mxu0 0.0
  %80 = vmatpush1.msra.mxu0 0.0
  %81 = vmatprep.subr.mxu0 0.0
  %82 = vmatpush1.msra.mxu0 0.0
  %83 = vmatprep.subr.mxu0 0.0
  %84 = vmatpush1.msra.mxu0 0.0
  %85 = vmatprep.subr.mxu0 0.0
  %86 = vmatpush1.msra.mxu0 0.0
  %87 = vmatprep.subr.mxu0 0.0
  %88 = vmatpush1.msra.mxu0 0.0
  %89 = vmatprep.subr.mxu0 0.0
  %90 = vmatpush1.msra.mxu0 0.0
  %91 = vmatprep.subr.mxu0 0.0
  %92 = vmatpush1.msra.mxu0 0.0
  %93 = vmatprep.mubr.f32.mxu0 0.0
  %94 = vmatmul.mubr.f32.gmra.mrb[0].mxu0 %v27
  %v95 = vpop.f32.mrb[0].mxu0
  %v96 = vadd.f32 0.0, %v95
  %v97 = vpop.f32.mrb[0].mxu0
  %98 = vdwg.mxu0
  %v99 = vadd.f32 %v20, %v96
  %v100 = vxor.u32 %v99, 2147483648
  %v101 = vmul.f32 %v100, 1.442695
  %v102 = vpow.pop %v101
  %v103 = vadd.f32 %v102, 1.0
  %v104 = vrcp.pop %v103
  %v105 = vmul.f32 1.0, %v104
  %v106 = vtanh.pop %v99
  %108 = vrot.lane.b32.xlu0 %v19, 32
  %v109 = vpop.permute.xlu0 %108
  %v111 = vmul.f32 %v105, %v109
  %113 = vrot.lane.b32.xlu0 %v106, 32
  %v114 = vpop.permute.xlu0 %113
  %v116 = vmul.f32 %v105, %v114
  %118 = vrot.lane.b32.xlu0 %v116, 32
  %v119 = vpop.permute.xlu0 %118
  %v121 = vadd.f32 %v111, %v119
  %v122 = vtanh.pop %v121
  %124 = vrot.lane.b32.xlu0 %v122, 32
  %v125 = vpop.permute.xlu0 %124
  %v127 = vmul.f32 %v105, %v125
  %129 = vrot.lane.b32.xlu0 %v127, 64
  %v130 = vpop.permute.xlu0 %129
  %vm132 = vcmask 254976
  %133 = vst.msk [vmem:[%s2] sm:$0x3] %vm132, %v130
  %s134 = scalar_lea.vmem %s0, 2
  %v135 = vld [vmem:[%s134] sm:$0x3]
  %v136 = vld [vmem:[%s1] sm:$0xff]
  %v137 = vld [vmem:[%s1 + $0x8] sm:$0xff]
  %v138 = vld [vmem:[%s1 + $0x10] sm:$0xff]
  %v139 = vld [vmem:[%s1 + $0x18] sm:$0xff]
  %v140 = vsel %vm25, %v130, 0
  %142 = vmatprep.subr.mxu0 0.0
  %143 = vmatpush1.msra.mxu0 %v136
  %144 = vmatprep.subr.mxu0 0.0
  %145 = vmatpush1.msra.mxu0 %v137
  %146 = vmatprep.subr.mxu0 0.0
  %147 = vmatpush1.msra.mxu0 %v138
  %148 = vmatprep.subr.mxu0 0.0
  %149 = vmatpush1.msra.mxu0 %v139
  %150 = vmatprep.subr.mxu0 0.0
  %151 = vmatpush1.msra.mxu0 0.0
  %152 = vmatprep.subr.mxu0 0.0
  %153 = vmatpush1.msra.mxu0 0.0
  %154 = vmatprep.subr.mxu0 0.0
  %155 = vmatpush1.msra.mxu0 0.0
  %156 = vmatprep.subr.mxu0 0.0
  %157 = vmatpush1.msra.mxu0 0.0
  %158 = vmatprep.subr.mxu0 0.0
  %159 = vmatpush1.msra.mxu0 0.0
  %160 = vmatprep.subr.mxu0 0.0
  %161 = vmatpush1.msra.mxu0 0.0
  %162 = vmatprep.subr.mxu0 0.0
  %163 = vmatpush1.msra.mxu0 0.0
  %164 = vmatprep.subr.mxu0 0.0
  %165 = vmatpush1.msra.mxu0 0.0
  %166 = vmatprep.subr.mxu0 0.0
  %167 = vmatpush1.msra.mxu0 0.0
  %168 = vmatprep.subr.mxu0 0.0
  %169 = vmatpush1.msra.mxu0 0.0
  %170 = vmatprep.subr.mxu0 0.0
  %171 = vmatpush1.msra.mxu0 0.0
  %172 = vmatprep.subr.mxu0 0.0
  %173 = vmatpush1.msra.mxu0 0.0
  %174 = vmatprep.subr.mxu0 0.0
  %175 = vmatpush1.msra.mxu0 0.0
  %176 = vmatprep.subr.mxu0 0.0
  %177 = vmatpush1.msra.mxu0 0.0
  %178 = vmatprep.subr.mxu0 0.0
  %179 = vmatpush1.msra.mxu0 0.0
  %180 = vmatprep.subr.mxu0 0.0
  %181 = vmatpush1.msra.mxu0 0.0
  %182 = vmatprep.subr.mxu0 0.0
  %183 = vmatpush1.msra.mxu0 0.0
  %184 = vmatprep.subr.mxu0 0.0
  %185 = vmatpush1.msra.mxu0 0.0
  %186 = vmatprep.subr.mxu0 0.0
  %187 = vmatpush1.msra.mxu0 0.0
  %188 = vmatprep.subr.mxu0 0.0
  %189 = vmatpush1.msra.mxu0 0.0
  %190 = vmatprep.subr.mxu0 0.0
  %191 = vmatpush1.msra.mxu0 0.0
  %192 = vmatprep.subr.mxu0 0.0
  %193 = vmatpush1.msra.mxu0 0.0
  %194 = vmatprep.subr.mxu0 0.0
  %195 = vmatpush1.msra.mxu0 0.0
  %196 = vmatprep.subr.mxu0 0.0
  %197 = vmatpush1.msra.mxu0 0.0
  %198 = vmatprep.subr.mxu0 0.0
  %199 = vmatpush1.msra.mxu0 0.0
  %200 = vmatprep.subr.mxu0 0.0
  %201 = vmatpush1.msra.mxu0 0.0
  %202 = vmatprep.subr.mxu0 0.0
  %203 = vmatpush1.msra.mxu0 0.0
  %204 = vmatprep.subr.mxu0 0.0
  %205 = vmatpush1.msra.mxu0 0.0
  %206 = vmatprep.mubr.f32.mxu0 0.0
  %207 = vmatmul.mubr.f32.gmra.mrb[0].mxu0 %v140
  %v208 = vpop.f32.mrb[0].mxu0
  %v209 = vadd.f32 0.0, %v208
  %v210 = vpop.f32.mrb[0].mxu0
  %211 = vdwg.mxu0
  %v212 = vadd.f32 %v135, %v209
  %v213 = vxor.u32 %v212, 2147483648
  %v214 = vmul.f32 %v213, 1.442695
  %v215 = vpow.pop %v214
  %v216 = vadd.f32 %v215, 1.0
  %v217 = vrcp.pop %v216
  %v218 = vmul.f32 1.0, %v217
  %v219 = vtanh.pop %v212
  %v220 = vmul.f32 %v218, %v121
  %222 = vrot.lane.b32.xlu0 %v219, 32
  %v223 = vpop.permute.xlu0 %222
  %v225 = vmul.f32 %v218, %v223
  %227 = vrot.lane.b32.xlu0 %v225, 32
  %v228 = vpop.permute.xlu0 %227
  %v230 = vadd.f32 %v220, %v228
  %v231 = vtanh.pop %v230
  %233 = vrot.lane.b32.xlu0 %v231, 32
  %v234 = vpop.permute.xlu0 %233
  %v236 = vmul.f32 %v218, %v234
  %238 = vrot.lane.b32.xlu0 %v236, 64
  %v239 = vpop.permute.xlu0 %238
  %s241 = scalar_lea.vmem %s2, 2
  %242 = vst.msk [vmem:[%s241] sm:$0x3] %vm132, %v239
  %s243 = scalar_lea.vmem %s0, 4
  %v244 = vld [vmem:[%s243] sm:$0x3]
  %v245 = vld [vmem:[%s1] sm:$0xff]
  %v246 = vld [vmem:[%s1 + $0x8] sm:$0xff]
  %v247 = vld [vmem:[%s1 + $0x10] sm:$0xff]
  %v248 = vld [vmem:[%s1 + $0x18] sm:$0xff]
  %v249 = vsel %vm25, %v239, 0
  %251 = vmatprep.subr.mxu0 0.0
  %252 = vmatpush1.msra.mxu0 %v245
  %253 = vmatprep.subr.mxu0 0.0
  %254 = vmatpush1.msra.mxu0 %v246
  %255 = vmatprep.subr.mxu0 0.0
  %256 = vmatpush1.msra.mxu0 %v247
  %257 = vmatprep.subr.mxu0 0.0
  %258 = vmatpush1.msra.mxu0 %v248
  %259 = vmatprep.subr.mxu0 0.0
  %260 = vmatpush1.msra.mxu0 0.0
  %261 = vmatprep.subr.mxu0 0.0
  %262 = vmatpush1.msra.mxu0 0.0
  %263 = vmatprep.subr.mxu0 0.0
  %264 = vmatpush1.msra.mxu0 0.0
  %265 = vmatprep.subr.mxu0 0.0
  %266 = vmatpush1.msra.mxu0 0.0
  %267 = vmatprep.subr.mxu0 0.0
  %268 = vmatpush1.msra.mxu0 0.0
  %269 = vmatprep.subr.mxu0 0.0
  %270 = vmatpush1.msra.mxu0 0.0
  %271 = vmatprep.subr.mxu0 0.0
  %272 = vmatpush1.msra.mxu0 0.0
  %273 = vmatprep.subr.mxu0 0.0
  %274 = vmatpush1.msra.mxu0 0.0
  %275 = vmatprep.subr.mxu0 0.0
  %276 = vmatpush1.msra.mxu0 0.0
  %277 = vmatprep.subr.mxu0 0.0
  %278 = vmatpush1.msra.mxu0 0.0
  %279 = vmatprep.subr.mxu0 0.0
  %280 = vmatpush1.msra.mxu0 0.0
  %281 = vmatprep.subr.mxu0 0.0
  %282 = vmatpush1.msra.mxu0 0.0
  %283 = vmatprep.subr.mxu0 0.0
  %284 = vmatpush1.msra.mxu0 0.0
  %285 = vmatprep.subr.mxu0 0.0
  %286 = vmatpush1.msra.mxu0 0.0
  %287 = vmatprep.subr.mxu0 0.0
  %288 = vmatpush1.msra.mxu0 0.0
  %289 = vmatprep.subr.mxu0 0.0
  %290 = vmatpush1.msra.mxu0 0.0
  %291 = vmatprep.subr.mxu0 0.0
  %292 = vmatpush1.msra.mxu0 0.0
  %293 = vmatprep.subr.mxu0 0.0
  %294 = vmatpush1.msra.mxu0 0.0
  %295 = vmatprep.subr.mxu0 0.0
  %296 = vmatpush1.msra.mxu0 0.0
  %297 = vmatprep.subr.mxu0 0.0
  %298 = vmatpush1.msra.mxu0 0.0
  %299 = vmatprep.subr.mxu0 0.0
  %300 = vmatpush1.msra.mxu0 0.0
  %301 = vmatprep.subr.mxu0 0.0
  %302 = vmatpush1.msra.mxu0 0.0
  %303 = vmatprep.subr.mxu0 0.0
  %304 = vmatpush1.msra.mxu0 0.0
  %305 = vmatprep.subr.mxu0 0.0
  %306 = vmatpush1.msra.mxu0 0.0
  %307 = vmatprep.subr.mxu0 0.0
  %308 = vmatpush1.msra.mxu0 0.0
  %309 = vmatprep.subr.mxu0 0.0
  %310 = vmatpush1.msra.mxu0 0.0
  %311 = vmatprep.subr.mxu0 0.0
  %312 = vmatpush1.msra.mxu0 0.0
  %313 = vmatprep.subr.mxu0 0.0
  %314 = vmatpush1.msra.mxu0 0.0
  %315 = vmatprep.mubr.f32.mxu0 0.0
  %316 = vmatmul.mubr.f32.gmra.mrb[0].mxu0 %v249
  %v317 = vpop.f32.mrb[0].mxu0
  %v318 = vadd.f32 0.0, %v317
  %v319 = vpop.f32.mrb[0].mxu0
  %320 = vdwg.mxu0
  %v321 = vadd.f32 %v244, %v318
  %v322 = vxor.u32 %v321, 2147483648
  %v323 = vmul.f32 %v322, 1.442695
  %v324 = vpow.pop %v323
  %v325 = vadd.f32 %v324, 1.0
  %v326 = vrcp.pop %v325
  %v327 = vmul.f32 1.0, %v326
  %v328 = vtanh.pop %v321
  %v329 = vmul.f32 %v327, %v230
  %331 = vrot.lane.b32.xlu0 %v328, 32
  %v332 = vpop.permute.xlu0 %331
  %v334 = vmul.f32 %v327, %v332
  %336 = vrot.lane.b32.xlu0 %v334, 32
  %v337 = vpop.permute.xlu0 %336
  %v339 = vadd.f32 %v329, %v337
  %v340 = vtanh.pop %v339
  %342 = vrot.lane.b32.xlu0 %v340, 32
  %v343 = vpop.permute.xlu0 %342
  %v345 = vmul.f32 %v327, %v343
  %347 = vrot.lane.b32.xlu0 %v345, 64
  %v348 = vpop.permute.xlu0 %347
  %s350 = scalar_lea.vmem %s2, 4
  %351 = vst.msk [vmem:[%s350] sm:$0x3] %vm132, %v348
  %s352 = scalar_lea.vmem %s0, 6
  %v353 = vld [vmem:[%s352] sm:$0x3]
  %v354 = vld [vmem:[%s1] sm:$0xff]
  %v355 = vld [vmem:[%s1 + $0x8] sm:$0xff]
  %v356 = vld [vmem:[%s1 + $0x10] sm:$0xff]
  %v357 = vld [vmem:[%s1 + $0x18] sm:$0xff]
  %v358 = vsel %vm25, %v348, 0
  %360 = vmatprep.subr.mxu0 0.0
  %361 = vmatpush1.msra.mxu0 %v354
  %362 = vmatprep.subr.mxu0 0.0
  %363 = vmatpush1.msra.mxu0 %v355
  %364 = vmatprep.subr.mxu0 0.0
  %365 = vmatpush1.msra.mxu0 %v356
  %366 = vmatprep.subr.mxu0 0.0
  %367 = vmatpush1.msra.mxu0 %v357
  %368 = vmatprep.subr.mxu0 0.0
  %369 = vmatpush1.msra.mxu0 0.0
  %370 = vmatprep.subr.mxu0 0.0
  %371 = vmatpush1.msra.mxu0 0.0
  %372 = vmatprep.subr.mxu0 0.0
  %373 = vmatpush1.msra.mxu0 0.0
  %374 = vmatprep.subr.mxu0 0.0
  %375 = vmatpush1.msra.mxu0 0.0
  %376 = vmatprep.subr.mxu0 0.0
  %377 = vmatpush1.msra.mxu0 0.0
  %378 = vmatprep.subr.mxu0 0.0
  %379 = vmatpush1.msra.mxu0 0.0
  %380 = vmatprep.subr.mxu0 0.0
  %381 = vmatpush1.msra.mxu0 0.0
  %382 = vmatprep.subr.mxu0 0.0
  %383 = vmatpush1.msra.mxu0 0.0
  %384 = vmatprep.subr.mxu0 0.0
  %385 = vmatpush1.msra.mxu0 0.0
  %386 = vmatprep.subr.mxu0 0.0
  %387 = vmatpush1.msra.mxu0 0.0
  %388 = vmatprep.subr.mxu0 0.0
  %389 = vmatpush1.msra.mxu0 0.0
  %390 = vmatprep.subr.mxu0 0.0
  %391 = vmatpush1.msra.mxu0 0.0
  %392 = vmatprep.subr.mxu0 0.0
  %393 = vmatpush1.msra.mxu0 0.0
  %394 = vmatprep.subr.mxu0 0.0
  %395 = vmatpush1.msra.mxu0 0.0
  %396 = vmatprep.subr.mxu0 0.0
  %397 = vmatpush1.msra.mxu0 0.0
  %398 = vmatprep.subr.mxu0 0.0
  %399 = vmatpush1.msra.mxu0 0.0
  %400 = vmatprep.subr.mxu0 0.0
  %401 = vmatpush1.msra.mxu0 0.0
  %402 = vmatprep.subr.mxu0 0.0
  %403 = vmatpush1.msra.mxu0 0.0
  %404 = vmatprep.subr.mxu0 0.0
  %405 = vmatpush1.msra.mxu0 0.0
  %406 = vmatprep.subr.mxu0 0.0
  %407 = vmatpush1.msra.mxu0 0.0
  %408 = vmatprep.subr.mxu0 0.0
  %409 = vmatpush1.msra.mxu0 0.0
  %410 = vmatprep.subr.mxu0 0.0
  %411 = vmatpush1.msra.mxu0 0.0
  %412 = vmatprep.subr.mxu0 0.0
  %413 = vmatpush1.msra.mxu0 0.0
  %414 = vmatprep.subr.mxu0 0.0
  %415 = vmatpush1.msra.mxu0 0.0
  %416 = vmatprep.subr.mxu0 0.0
  %417 = vmatpush1.msra.mxu0 0.0
  %418 = vmatprep.subr.mxu0 0.0
  %419 = vmatpush1.msra.mxu0 0.0
  %420 = vmatprep.subr.mxu0 0.0
  %421 = vmatpush1.msra.mxu0 0.0
  %422 = vmatprep.subr.mxu0 0.0
  %423 = vmatpush1.msra.mxu0 0.0
  %424 = vmatprep.mubr.f32.mxu0 0.0
  %425 = vmatmul.mubr.f32.gmra.mrb[0].mxu0 %v358
  %v426 = vpop.f32.mrb[0].mxu0
  %v427 = vadd.f32 0.0, %v426
  %v428 = vpop.f32.mrb[0].mxu0
  %429 = vdwg.mxu0
  %v430 = vadd.f32 %v353, %v427
  %v431 = vxor.u32 %v430, 2147483648
  %v432 = vmul.f32 %v431, 1.442695
  %v433 = vpow.pop %v432
  %v434 = vadd.f32 %v433, 1.0
  %v435 = vrcp.pop %v434
  %v436 = vmul.f32 1.0, %v435
  %v437 = vtanh.pop %v430
  %v438 = vmul.f32 %v436, %v339
  %440 = vrot.lane.b32.xlu0 %v437, 32
  %v441 = vpop.permute.xlu0 %440
  %v443 = vmul.f32 %v436, %v441
  %445 = vrot.lane.b32.xlu0 %v443, 32
  %v446 = vpop.permute.xlu0 %445
  %v448 = vadd.f32 %v438, %v446
  %v449 = vtanh.pop %v448
  %451 = vrot.lane.b32.xlu0 %v449, 32
  %v452 = vpop.permute.xlu0 %451
  %v454 = vmul.f32 %v436, %v452
  %456 = vrot.lane.b32.xlu0 %v454, 64
  %v457 = vpop.permute.xlu0 %456
  %s459 = scalar_lea.vmem %s2, 6
  %460 = vst.msk [vmem:[%s459] sm:$0x3] %vm132, %v457
  %s461 = scalar_lea.vmem %s0, 8
  %v462 = vld [vmem:[%s461] sm:$0x3]
  %v463 = vld [vmem:[%s1] sm:$0xff]
  %v464 = vld [vmem:[%s1 + $0x8] sm:$0xff]
  %v465 = vld [vmem:[%s1 + $0x10] sm:$0xff]
  %v466 = vld [vmem:[%s1 + $0x18] sm:$0xff]
  %v467 = vsel %vm25, %v457, 0
  %469 = vmatprep.subr.mxu0 0.0
  %470 = vmatpush1.msra.mxu0 %v463
  %471 = vmatprep.subr.mxu0 0.0
  %472 = vmatpush1.msra.mxu0 %v464
  %473 = vmatprep.subr.mxu0 0.0
  %474 = vmatpush1.msra.mxu0 %v465
  %475 = vmatprep.subr.mxu0 0.0
  %476 = vmatpush1.msra.mxu0 %v466
  %477 = vmatprep.subr.mxu0 0.0
  %478 = vmatpush1.msra.mxu0 0.0
  %479 = vmatprep.subr.mxu0 0.0
  %480 = vmatpush1.msra.mxu0 0.0
  %481 = vmatprep.subr.mxu0 0.0
  %482 = vmatpush1.msra.mxu0 0.0
  %483 = vmatprep.subr.mxu0 0.0
  %484 = vmatpush1.msra.mxu0 0.0
  %485 = vmatprep.subr.mxu0 0.0
  %486 = vmatpush1.msra.mxu0 0.0
  %487 = vmatprep.subr.mxu0 0.0
  %488 = vmatpush1.msra.mxu0 0.0
  %489 = vmatprep.subr.mxu0 0.0
  %490 = vmatpush1.msra.mxu0 0.0
  %491 = vmatprep.subr.mxu0 0.0
  %492 = vmatpush1.msra.mxu0 0.0
  %493 = vmatprep.subr.mxu0 0.0
  %494 = vmatpush1.msra.mxu0 0.0
  %495 = vmatprep.subr.mxu0 0.0
  %496 = vmatpush1.msra.mxu0 0.0
  %497 = vmatprep.subr.mxu0 0.0
  %498 = vmatpush1.msra.mxu0 0.0
  %499 = vmatprep.subr.mxu0 0.0
  %500 = vmatpush1.msra.mxu0 0.0
  %501 = vmatprep.subr.mxu0 0.0
  %502 = vmatpush1.msra.mxu0 0.0
  %503 = vmatprep.subr.mxu0 0.0
  %504 = vmatpush1.msra.mxu0 0.0
  %505 = vmatprep.subr.mxu0 0.0
  %506 = vmatpush1.msra.mxu0 0.0
  %507 = vmatprep.subr.mxu0 0.0
  %508 = vmatpush1.msra.mxu0 0.0
  %509 = vmatprep.subr.mxu0 0.0
  %510 = vmatpush1.msra.mxu0 0.0
  %511 = vmatprep.subr.mxu0 0.0
  %512 = vmatpush1.msra.mxu0 0.0
  %513 = vmatprep.subr.mxu0 0.0
  %514 = vmatpush1.msra.mxu0 0.0
  %515 = vmatprep.subr.mxu0 0.0
  %516 = vmatpush1.msra.mxu0 0.0
  %517 = vmatprep.subr.mxu0 0.0
  %518 = vmatpush1.msra.mxu0 0.0
  %519 = vmatprep.subr.mxu0 0.0
  %520 = vmatpush1.msra.mxu0 0.0
  %521 = vmatprep.subr.mxu0 0.0
  %522 = vmatpush1.msra.mxu0 0.0
  %523 = vmatprep.subr.mxu0 0.0
  %524 = vmatpush1.msra.mxu0 0.0
  %525 = vmatprep.subr.mxu0 0.0
  %526 = vmatpush1.msra.mxu0 0.0
  %527 = vmatprep.subr.mxu0 0.0
  %528 = vmatpush1.msra.mxu0 0.0
  %529 = vmatprep.subr.mxu0 0.0
  %530 = vmatpush1.msra.mxu0 0.0
  %531 = vmatprep.subr.mxu0 0.0
  %532 = vmatpush1.msra.mxu0 0.0
  %533 = vmatprep.mubr.f32.mxu0 0.0
  %534 = vmatmul.mubr.f32.gmra.mrb[0].mxu0 %v467
  %v535 = vpop.f32.mrb[0].mxu0
  %v536 = vadd.f32 0.0, %v535
  %v537 = vpop.f32.mrb[0].mxu0
  %538 = vdwg.mxu0
  %v539 = vadd.f32 %v462, %v536
  %v540 = vxor.u32 %v539, 2147483648
  %v541 = vmul.f32 %v540, 1.442695
  %v542 = vpow.pop %v541
  %v543 = vadd.f32 %v542, 1.0
  %v544 = vrcp.pop %v543
  %v545 = vmul.f32 1.0, %v544
  %v546 = vtanh.pop %v539
  %v547 = vmul.f32 %v545, %v448
  %549 = vrot.lane.b32.xlu0 %v546, 32
  %v550 = vpop.permute.xlu0 %549
  %v552 = vmul.f32 %v545, %v550
  %554 = vrot.lane.b32.xlu0 %v552, 32
  %v555 = vpop.permute.xlu0 %554
  %v557 = vadd.f32 %v547, %v555
  %v558 = vtanh.pop %v557
  %560 = vrot.lane.b32.xlu0 %v558, 32
  %v561 = vpop.permute.xlu0 %560
  %v563 = vmul.f32 %v545, %v561
  %565 = vrot.lane.b32.xlu0 %v563, 64
  %v566 = vpop.permute.xlu0 %565
  %s568 = scalar_lea.vmem %s2, 8
  %569 = vst.msk [vmem:[%s568] sm:$0x3] %vm132, %v566
  %s570 = scalar_lea.vmem %s0, 10
  %v571 = vld [vmem:[%s570] sm:$0x3]
  %v572 = vld [vmem:[%s1] sm:$0xff]
  %v573 = vld [vmem:[%s1 + $0x8] sm:$0xff]
  %v574 = vld [vmem:[%s1 + $0x10] sm:$0xff]
  %v575 = vld [vmem:[%s1 + $0x18] sm:$0xff]
  %v576 = vsel %vm25, %v566, 0
  %578 = vmatprep.subr.mxu0 0.0
  %579 = vmatpush1.msra.mxu0 %v572
  %580 = vmatprep.subr.mxu0 0.0
  %581 = vmatpush1.msra.mxu0 %v573
  %582 = vmatprep.subr.mxu0 0.0
  %583 = vmatpush1.msra.mxu0 %v574
  %584 = vmatprep.subr.mxu0 0.0
  %585 = vmatpush1.msra.mxu0 %v575
  %586 = vmatprep.subr.mxu0 0.0
  %587 = vmatpush1.msra.mxu0 0.0
  %588 = vmatprep.subr.mxu0 0.0
  %589 = vmatpush1.msra.mxu0 0.0
  %590 = vmatprep.subr.mxu0 0.0
  %591 = vmatpush1.msra.mxu0 0.0
  %592 = vmatprep.subr.mxu0 0.0
  %593 = vmatpush1.msra.mxu0 0.0
  %594 = vmatprep.subr.mxu0 0.0
  %595 = vmatpush1.msra.mxu0 0.0
  %596 = vmatprep.subr.mxu0 0.0
  %597 = vmatpush1.msra.mxu0 0.0
  %598 = vmatprep.subr.mxu0 0.0
  %599 = vmatpush1.msra.mxu0 0.0
  %600 = vmatprep.subr.mxu0 0.0
  %601 = vmatpush1.msra.mxu0 0.0
  %602 = vmatprep.subr.mxu0 0.0
  %603 = vmatpush1.msra.mxu0 0.0
  %604 = vmatprep.subr.mxu0 0.0
  %605 = vmatpush1.msra.mxu0 0.0
  %606 = vmatprep.subr.mxu0 0.0
  %607 = vmatpush1.msra.mxu0 0.0
  %608 = vmatprep.subr.mxu0 0.0
  %609 = vmatpush1.msra.mxu0 0.0
  %610 = vmatprep.subr.mxu0 0.0
  %611 = vmatpush1.msra.mxu0 0.0
  %612 = vmatprep.subr.mxu0 0.0
  %613 = vmatpush1.msra.mxu0 0.0
  %614 = vmatprep.subr.mxu0 0.0
  %615 = vmatpush1.msra.mxu0 0.0
  %616 = vmatprep.subr.mxu0 0.0
  %617 = vmatpush1.msra.mxu0 0.0
  %618 = vmatprep.subr.mxu0 0.0
  %619 = vmatpush1.msra.mxu0 0.0
  %620 = vmatprep.subr.mxu0 0.0
  %621 = vmatpush1.msra.mxu0 0.0
  %622 = vmatprep.subr.mxu0 0.0
  %623 = vmatpush1.msra.mxu0 0.0
  %624 = vmatprep.subr.mxu0 0.0
  %625 = vmatpush1.msra.mxu0 0.0
  %626 = vmatprep.subr.mxu0 0.0
  %627 = vmatpush1.msra.mxu0 0.0
  %628 = vmatprep.subr.mxu0 0.0
  %629 = vmatpush1.msra.mxu0 0.0
  %630 = vmatprep.subr.mxu0 0.0
  %631 = vmatpush1.msra.mxu0 0.0
  %632 = vmatprep.subr.mxu0 0.0
  %633 = vmatpush1.msra.mxu0 0.0
  %634 = vmatprep.subr.mxu0 0.0
  %635 = vmatpush1.msra.mxu0 0.0
  %636 = vmatprep.subr.mxu0 0.0
  %637 = vmatpush1.msra.mxu0 0.0
  %638 = vmatprep.subr.mxu0 0.0
  %639 = vmatpush1.msra.mxu0 0.0
  %640 = vmatprep.subr.mxu0 0.0
  %641 = vmatpush1.msra.mxu0 0.0
  %642 = vmatprep.mubr.f32.mxu0 0.0
  %643 = vmatmul.mubr.f32.gmra.mrb[0].mxu0 %v576
  %v644 = vpop.f32.mrb[0].mxu0
  %v645 = vadd.f32 0.0, %v644
  %v646 = vpop.f32.mrb[0].mxu0
  %647 = vdwg.mxu0
  %v648 = vadd.f32 %v571, %v645
  %v649 = vxor.u32 %v648, 2147483648
  %v650 = vmul.f32 %v649, 1.442695
  %v651 = vpow.pop %v650
  %v652 = vadd.f32 %v651, 1.0
  %v653 = vrcp.pop %v652
  %v654 = vmul.f32 1.0, %v653
  %v655 = vtanh.pop %v648
  %v656 = vmul.f32 %v654, %v557
  %658 = vrot.lane.b32.xlu0 %v655, 32
  %v659 = vpop.permute.xlu0 %658
  %v661 = vmul.f32 %v654, %v659
  %663 = vrot.lane.b32.xlu0 %v661, 32
  %v664 = vpop.permute.xlu0 %663
  %v666 = vadd.f32 %v656, %v664
  %v667 = vtanh.pop %v666
  %669 = vrot.lane.b32.xlu0 %v667, 32
  %v670 = vpop.permute.xlu0 %669
  %v672 = vmul.f32 %v654, %v670
  %674 = vrot.lane.b32.xlu0 %v672, 64
  %v675 = vpop.permute.xlu0 %674
  %s677 = scalar_lea.vmem %s2, 10
  %678 = vst.msk [vmem:[%s677] sm:$0x3] %vm132, %v675
  %s679 = scalar_lea.vmem %s0, 12
  %v680 = vld [vmem:[%s679] sm:$0x3]
  %v681 = vld [vmem:[%s1] sm:$0xff]
  %v682 = vld [vmem:[%s1 + $0x8] sm:$0xff]
  %v683 = vld [vmem:[%s1 + $0x10] sm:$0xff]
  %v684 = vld [vmem:[%s1 + $0x18] sm:$0xff]
  %v685 = vsel %vm25, %v675, 0
  %687 = vmatprep.subr.mxu0 0.0
  %688 = vmatpush1.msra.mxu0 %v681
  %689 = vmatprep.subr.mxu0 0.0
  %690 = vmatpush1.msra.mxu0 %v682
  %691 = vmatprep.subr.mxu0 0.0
  %692 = vmatpush1.msra.mxu0 %v683
  %693 = vmatprep.subr.mxu0 0.0
  %694 = vmatpush1.msra.mxu0 %v684
  %695 = vmatprep.subr.mxu0 0.0
  %696 = vmatpush1.msra.mxu0 0.0
  %697 = vmatprep.subr.mxu0 0.0
  %698 = vmatpush1.msra.mxu0 0.0
  %699 = vmatprep.subr.mxu0 0.0
  %700 = vmatpush1.msra.mxu0 0.0
  %701 = vmatprep.subr.mxu0 0.0
  %702 = vmatpush1.msra.mxu0 0.0
  %703 = vmatprep.subr.mxu0 0.0
  %704 = vmatpush1.msra.mxu0 0.0
  %705 = vmatprep.subr.mxu0 0.0
  %706 = vmatpush1.msra.mxu0 0.0
  %707 = vmatprep.subr.mxu0 0.0
  %708 = vmatpush1.msra.mxu0 0.0
  %709 = vmatprep.subr.mxu0 0.0
  %710 = vmatpush1.msra.mxu0 0.0
  %711 = vmatprep.subr.mxu0 0.0
  %712 = vmatpush1.msra.mxu0 0.0
  %713 = vmatprep.subr.mxu0 0.0
  %714 = vmatpush1.msra.mxu0 0.0
  %715 = vmatprep.subr.mxu0 0.0
  %716 = vmatpush1.msra.mxu0 0.0
  %717 = vmatprep.subr.mxu0 0.0
  %718 = vmatpush1.msra.mxu0 0.0
  %719 = vmatprep.subr.mxu0 0.0
  %720 = vmatpush1.msra.mxu0 0.0
  %721 = vmatprep.subr.mxu0 0.0
  %722 = vmatpush1.msra.mxu0 0.0
  %723 = vmatprep.subr.mxu0 0.0
  %724 = vmatpush1.msra.mxu0 0.0
  %725 = vmatprep.subr.mxu0 0.0
  %726 = vmatpush1.msra.mxu0 0.0
  %727 = vmatprep.subr.mxu0 0.0
  %728 = vmatpush1.msra.mxu0 0.0
  %729 = vmatprep.subr.mxu0 0.0
  %730 = vmatpush1.msra.mxu0 0.0
  %731 = vmatprep.subr.mxu0 0.0
  %732 = vmatpush1.msra.mxu0 0.0
  %733 = vmatprep.subr.mxu0 0.0
  %734 = vmatpush1.msra.mxu0 0.0
  %735 = vmatprep.subr.mxu0 0.0
  %736 = vmatpush1.msra.mxu0 0.0
  %737 = vmatprep.subr.mxu0 0.0
  %738 = vmatpush1.msra.mxu0 0.0
  %739 = vmatprep.subr.mxu0 0.0
  %740 = vmatpush1.msra.mxu0 0.0
  %741 = vmatprep.subr.mxu0 0.0
  %742 = vmatpush1.msra.mxu0 0.0
  %743 = vmatprep.subr.mxu0 0.0
  %744 = vmatpush1.msra.mxu0 0.0
  %745 = vmatprep.subr.mxu0 0.0
  %746 = vmatpush1.msra.mxu0 0.0
  %747 = vmatprep.subr.mxu0 0.0
  %748 = vmatpush1.msra.mxu0 0.0
  %749 = vmatprep.subr.mxu0 0.0
  %750 = vmatpush1.msra.mxu0 0.0
  %751 = vmatprep.mubr.f32.mxu0 0.0
  %752 = vmatmul.mubr.f32.gmra.mrb[0].mxu0 %v685
  %v753 = vpop.f32.mrb[0].mxu0
  %v754 = vadd.f32 0.0, %v753
  %v755 = vpop.f32.mrb[0].mxu0
  %756 = vdwg.mxu0
  %v757 = vadd.f32 %v680, %v754
  %v758 = vxor.u32 %v757, 2147483648
  %v759 = vmul.f32 %v758, 1.442695
  %v760 = vpow.pop %v759
  %v761 = vadd.f32 %v760, 1.0
  %v762 = vrcp.pop %v761
  %v763 = vmul.f32 1.0, %v762
  %v764 = vtanh.pop %v757
  %v765 = vmul.f32 %v763, %v666
  %767 = vrot.lane.b32.xlu0 %v764, 32
  %v768 = vpop.permute.xlu0 %767
  %v770 = vmul.f32 %v763, %v768
  %772 = vrot.lane.b32.xlu0 %v770, 32
  %v773 = vpop.permute.xlu0 %772
  %v775 = vadd.f32 %v765, %v773
  %v776 = vtanh.pop %v775
  %778 = vrot.lane.b32.xlu0 %v776, 32
  %v779 = vpop.permute.xlu0 %778
  %v781 = vmul.f32 %v763, %v779
  %783 = vrot.lane.b32.xlu0 %v781, 64
  %v784 = vpop.permute.xlu0 %783
  %s786 = scalar_lea.vmem %s2, 12
  %787 = vst.msk [vmem:[%s786] sm:$0x3] %vm132, %v784
  %s788 = scalar_lea.vmem %s0, 14
  %v789 = vld [vmem:[%s788] sm:$0x3]
  %v790 = vld [vmem:[%s1] sm:$0xff]
  %v791 = vld [vmem:[%s1 + $0x8] sm:$0xff]
  %v792 = vld [vmem:[%s1 + $0x10] sm:$0xff]
  %v793 = vld [vmem:[%s1 + $0x18] sm:$0xff]
  %v794 = vsel %vm25, %v784, 0
  %796 = vmatprep.subr.mxu0 0.0
  %797 = vmatpush1.msra.mxu0 %v790
  %798 = vmatprep.subr.mxu0 0.0
  %799 = vmatpush1.msra.mxu0 %v791
  %800 = vmatprep.subr.mxu0 0.0
  %801 = vmatpush1.msra.mxu0 %v792
  %802 = vmatprep.subr.mxu0 0.0
  %803 = vmatpush1.msra.mxu0 %v793
  %804 = vmatprep.subr.mxu0 0.0
  %805 = vmatpush1.msra.mxu0 0.0
  %806 = vmatprep.subr.mxu0 0.0
  %807 = vmatpush1.msra.mxu0 0.0
  %808 = vmatprep.subr.mxu0 0.0
  %809 = vmatpush1.msra.mxu0 0.0
  %810 = vmatprep.subr.mxu0 0.0
  %811 = vmatpush1.msra.mxu0 0.0
  %812 = vmatprep.subr.mxu0 0.0
  %813 = vmatpush1.msra.mxu0 0.0
  %814 = vmatprep.subr.mxu0 0.0
  %815 = vmatpush1.msra.mxu0 0.0
  %816 = vmatprep.subr.mxu0 0.0
  %817 = vmatpush1.msra.mxu0 0.0
  %818 = vmatprep.subr.mxu0 0.0
  %819 = vmatpush1.msra.mxu0 0.0
  %820 = vmatprep.subr.mxu0 0.0
  %821 = vmatpush1.msra.mxu0 0.0
  %822 = vmatprep.subr.mxu0 0.0
  %823 = vmatpush1.msra.mxu0 0.0
  %824 = vmatprep.subr.mxu0 0.0
  %825 = vmatpush1.msra.mxu0 0.0
  %826 = vmatprep.subr.mxu0 0.0
  %827 = vmatpush1.msra.mxu0 0.0
  %828 = vmatprep.subr.mxu0 0.0
  %829 = vmatpush1.msra.mxu0 0.0
  %830 = vmatprep.subr.mxu0 0.0
  %831 = vmatpush1.msra.mxu0 0.0
  %832 = vmatprep.subr.mxu0 0.0
  %833 = vmatpush1.msra.mxu0 0.0
  %834 = vmatprep.subr.mxu0 0.0
  %835 = vmatpush1.msra.mxu0 0.0
  %836 = vmatprep.subr.mxu0 0.0
  %837 = vmatpush1.msra.mxu0 0.0
  %838 = vmatprep.subr.mxu0 0.0
  %839 = vmatpush1.msra.mxu0 0.0
  %840 = vmatprep.subr.mxu0 0.0
  %841 = vmatpush1.msra.mxu0 0.0
  %842 = vmatprep.subr.mxu0 0.0
  %843 = vmatpush1.msra.mxu0 0.0
  %844 = vmatprep.subr.mxu0 0.0
  %845 = vmatpush1.msra.mxu0 0.0
  %846 = vmatprep.subr.mxu0 0.0
  %847 = vmatpush1.msra.mxu0 0.0
  %848 = vmatprep.subr.mxu0 0.0
  %849 = vmatpush1.msra.mxu0 0.0
  %850 = vmatprep.subr.mxu0 0.0
  %851 = vmatpush1.msra.mxu0 0.0
  %852 = vmatprep.subr.mxu0 0.0
  %853 = vmatpush1.msra.mxu0 0.0
  %854 = vmatprep.subr.mxu0 0.0
  %855 = vmatpush1.msra.mxu0 0.0
  %856 = vmatprep.subr.mxu0 0.0
  %857 = vmatpush1.msra.mxu0 0.0
  %858 = vmatprep.subr.mxu0 0.0
  %859 = vmatpush1.msra.mxu0 0.0
  %860 = vmatprep.mubr.f32.mxu0 0.0
  %861 = vmatmul.mubr.f32.gmra.mrb[0].mxu0 %v794
  %v862 = vpop.f32.mrb[0].mxu0
  %v863 = vadd.f32 0.0, %v862
  %v864 = vpop.f32.mrb[0].mxu0
  %865 = vdwg.mxu0
  %v866 = vadd.f32 %v789, %v863
  %v867 = vxor.u32 %v866, 2147483648
  %v868 = vmul.f32 %v867, 1.442695
  %v869 = vpow.pop %v868
  %v870 = vadd.f32 %v869, 1.0
  %v871 = vrcp.pop %v870
  %v872 = vmul.f32 1.0, %v871
  %v873 = vtanh.pop %v866
  %v874 = vmul.f32 %v872, %v775
  %876 = vrot.lane.b32.xlu0 %v873, 32
  %v877 = vpop.permute.xlu0 %876
  %v879 = vmul.f32 %v872, %v877
  %881 = vrot.lane.b32.xlu0 %v879, 32
  %v882 = vpop.permute.xlu0 %881
  %v884 = vadd.f32 %v874, %v882
  %v885 = vtanh.pop %v884
  %887 = vrot.lane.b32.xlu0 %v885, 32
  %v888 = vpop.permute.xlu0 %887
  %v890 = vmul.f32 %v872, %v888
  %892 = vrot.lane.b32.xlu0 %v890, 64
  %v893 = vpop.permute.xlu0 %892
  %s895 = scalar_lea.vmem %s2, 14
  %896 = vst.msk [vmem:[%s895] sm:$0x3] %vm132, %v893
  %897 = vst.msk [vmem:[#allocation2] sm:$0x3] %vm132, %v893
  %899 = vrot.lane.b32.xlu0 %v884, 96
  %v900 = vpop.permute.xlu0 %899
  %902 = vst.msk [vmem:[#allocation3] sm:$0x3] %vm132, %v900
  // Predicated region
  $region14: #{task_lstm_forward.6} parent=0 // pred_check
    _
  $region15: #{task_lstm_forward.6} parent=0 // pred_check_branch
    %904 = sbr.rel (0) target = $region17
  $region16: #{task_lstm_forward.6} parent=0 // pred_region
    _
  $region17: #{task_lstm_forward.6} parent=0 // pred_fallthru
    _
  // Predicated region
  $region18: #{task_lstm_forward.6} parent=0 // pred_check
    _
  $region19: #{task_lstm_forward.6} parent=0 // pred_check_branch
    %906 = sbr.rel (0) target = $region21
  $region20: #{task_lstm_forward.6} parent=0 // pred_region
    _
  $region21: #{task_lstm_forward.6} parent=0 // pred_fallthru
    _

</llo_original>
